<compile_context>
chip_gen: v7x
topology: tpu7x:2x2x1
jax: 0.10.0
libtpu: 0.0.40
codegen_flags: <defaults>
</compile_context>

<pallas_src>
import math

import jax
import jax.numpy as jnp
import numpy as np
from jax import lax
from jax.experimental import pallas as pl
from jax.experimental.pallas import tpu as pltpu


def _make_kernel(B, L1, L2, D, H, n):
    DK = D // H
    BL1, BL2 = B * L1, B * L2
    NEG = -1e9
    NONE_CODE = -2.0

    def head_block(keys_f32):
        """(NK, D) f32 -> (H, NK, D) bf16: copy h keeps columns [h*DK,(h+1)*DK), rest 0.

        Head structure is built with iota compares (no precomputed mask DMA)."""
        NK = keys_f32.shape[0]
        hid = lax.broadcasted_iota(jnp.int32, (H, NK, D), 0)
        cid = lax.broadcasted_iota(jnp.int32, (H, NK, D), 2)
        sel = (cid >= hid * DK) & (cid < hid * DK + DK)
        kb = jnp.broadcast_to(keys_f32[None, :, :], (H, NK, D))
        return jnp.where(sel, kb, 0.0).astype(jnp.bfloat16)

    def attend(q_full, nq, k_full, v_bf, qrow_b, kcol_code):
        """mean_h softmax_h(q k^T) @ v for one direction.

        q_full   : (NQ_full, D) f32 projected queries; first nq rows are data rows
        k_full   : (NK, D) f32 projected keys (data rows then shared 'none' rows)
        v_bf     : (NK, D) bf16 values (same row order as the keys)
        qrow_b   : (nq, 1) f32 batch id per query row
        kcol_code: (1, NK) f32 per-key code: batch id (valid data), -1 (masked), -2 (none)
        """
        NK = k_full.shape[0]
        q = q_full[:nq, :].astype(jnp.bfloat16)                        # (nq, D)
        qh = jnp.broadcast_to(q[None, :, :], (H, nq, D))
        kh = head_block(k_full)                                        # (H, NK, D)
        s = jnp.einsum("hqd,hkd->hqk", qh, kh,
                       preferred_element_type=jnp.float32)             # (H, nq, NK)
        # In-kernel mask: same-batch valid data keys or the always-valid 'none' keys.
        ok = (kcol_code == qrow_b) | (kcol_code == NONE_CODE)          # (nq, NK) bool
        s = jnp.where(jnp.broadcast_to(ok[None, :, :], s.shape), s, NEG)
        e = jnp.exp(s - jnp.max(s, axis=-1, keepdims=True))
        inv = pl.reciprocal(jnp.sum(e, axis=-1, keepdims=True),
                            approx=True) * (1.0 / H)                   # fold head mean
        pm = jnp.sum(e * inv, axis=0)                                  # (nq, NK) f32
        return jnp.dot(pm.astype(jnp.bfloat16), v_bf,
                       preferred_element_type=jnp.float32)             # (nq, D) f32

    def kernel(v1_ref, v2_ref, d1_ref, d2_ref, qb1_ref, qb2_ref, kc1_ref, kc2_ref,
               wq1_ref, wq2_ref, w0a_ref, w0b_ref, b0_ref,
               w1a_ref, w1b_ref, b1_ref, out1_ref, out2_ref):
        v1 = v1_ref[...]                                               # (BL1+n, D) bf16
        v2 = v2_ref[...]                                               # (BL2+n, D) bf16
        # Shared no-bias projections, computed exactly once (wq1 carries 1/sqrt(DK)).
        q1 = jnp.dot(v1, wq1_ref[...], preferred_element_type=jnp.float32)
        q2 = jnp.dot(v2, wq2_ref[...], preferred_element_type=jnp.float32)

        # direction 2: queries = data1 rows, keys/values = side 2 -> weighted2 -> out1
        w2 = attend(q1, BL1, q2, v2, qb1_ref[...], kc2_ref[...])
        # direction 1: queries = data2 rows, keys/values = side 1 -> weighted1 -> out2
        w1 = attend(q2, BL2, q1, v1, qb2_ref[...], kc1_ref[...])

        # Residual linears: [d, w] @ W == d @ W[:D] + w @ W[D:] (weights split on host).
        pre1 = (jnp.dot(v1[:BL1, :], w0a_ref[...], preferred_element_type=jnp.float32)
                + jnp.dot(w2.astype(jnp.bfloat16), w0b_ref[...],
                          preferred_element_type=jnp.float32)
                + b0_ref[...])
        out1_ref[...] = d1_ref[...] + jnp.maximum(pre1, 0.0)

        pre2 = (jnp.dot(v2[:BL2, :], w1a_ref[...], preferred_element_type=jnp.float32)
                + jnp.dot(w1.astype(jnp.bfloat16), w1b_ref[...],
                          preferred_element_type=jnp.float32)
                + b1_ref[...])
        out2_ref[...] = d2_ref[...] + jnp.maximum(pre2, 0.0)

    return kernel


def normal_sublayer(data1, data2, mask1, mask2, params, num_attn):
    B, L1, D = data1.shape
    _, L2, D2 = data2.shape
    assert D == D2, "DenseCoAttn (non-multi-head path) requires dim1 == dim2"
    H = num_attn
    DK = D // H
    scale = 1.0 / math.sqrt(DK)
    nones = params["nones"].astype(jnp.float32)
    n = nones.shape[0]
    BL1, BL2 = B * L1, B * L2

    d1 = data1.reshape(BL1, D).astype(jnp.float32)
    d2 = data2.reshape(BL2, D).astype(jnp.float32)
    # bf16 matmul slabs: data rows followed by the shared "none" rows (appended so data
    # query rows start at offset 0; softmax over keys is order-invariant, so this matches
    # the module's prepended per-batch nones).
    v1_bf = jnp.concatenate([d1, nones], axis=0).astype(jnp.bfloat16)
    v2_bf = jnp.concatenate([d2, nones], axis=0).astype(jnp.bfloat16)

    # Tiny O(B*L) codes; the (nq, NK) attention mask is rebuilt in-kernel from these.
    def row_code(Lq):
        return jnp.repeat(jnp.arange(B, dtype=jnp.float32), Lq).reshape(B * Lq, 1)

    def col_code(mask_k):
        Bm, Lk = mask_k.shape
        bidx = jnp.repeat(jnp.arange(Bm, dtype=jnp.float32), Lk)
        data_code = jnp.where(mask_k.reshape(-1) > 0, bidx, -1.0)   # -1: masked data key
        none_code = jnp.full((n,), -2.0, jnp.float32)               # -2: always-valid none
        return jnp.concatenate([data_code, none_code]).reshape(1, Bm * Lk + n)

    qb1, qb2 = row_code(L1), row_code(L2)
    kc1 = col_code(mask1.astype(jnp.float32))
    kc2 = col_code(mask2.astype(jnp.float32))

    # Pre-cast weights to bf16; fold 1/sqrt(DK) into Wq1 (scores are bilinear, so either
    # projection carrying the scale gives exactly one factor per score in both directions).
    wq1_bf = (params["wq1"] * scale).astype(jnp.bfloat16)
    wq2_bf = params["wq2"].astype(jnp.bfloat16)
    w0, w1 = params["lin0_w"], params["lin1_w"]                      # (2D, D), out = x@W+b
    w0a_bf, w0b_bf = w0[:D].astype(jnp.bfloat16), w0[D:].astype(jnp.bfloat16)
    w1a_bf, w1b_bf = w1[:D].astype(jnp.bfloat16), w1[D:].astype(jnp.bfloat16)
    b0 = params["lin0_b"].reshape(1, D).astype(jnp.float32)
    b1 = params["lin1_b"].reshape(1, D).astype(jnp.float32)

    kernel = _make_kernel(B, L1, L2, D, H, n)
    vmem = pl.BlockSpec(memory_space=pltpu.MemorySpace.VMEM)
    out1, out2 = pl.pallas_call(
        kernel,
        out_shape=(jax.ShapeDtypeStruct((BL1, D), jnp.float32),
                   jax.ShapeDtypeStruct((BL2, D), jnp.float32)),
        in_specs=[vmem] * 16,
        out_specs=(vmem, vmem),
    )(v1_bf, v2_bf, d1, d2, qb1, qb2, kc1, kc2,
      wq1_bf, wq2_bf, w0a_bf, w0b_bf, b0, w1a_bf, w1b_bf, b1)

    return out1.reshape(B, L1, D), out2.reshape(B, L2, D)


def _reference(data1, data2, mask1, mask2, params, num_attn):
    """Pure-JAX reference mirroring the PyTorch module (eval mode)."""
    B, L1, D = data1.shape
    _, L2, _ = data2.shape
    nones = params["nones"]
    n = nones.shape[0]
    H, DK = num_attn, D // num_attn
    v1 = jnp.concatenate([jnp.broadcast_to(nones[None], (B, n, D)), data1], axis=1)
    v2 = jnp.concatenate([jnp.broadcast_to(nones[None], (B, n, D)), data2], axis=1)
    ones = jnp.ones((B, n), jnp.float32)
    m1 = jnp.concatenate([ones, mask1], axis=1)[:, None, None, :]
    m2 = jnp.concatenate([ones, mask2], axis=1)[:, None, None, :]
    q1 = jnp.einsum("bsd,de->bse", v1, params["wq1"], precision="highest")
    q2 = jnp.einsum("bsd,de->bse", v2, params["wq2"], precision="highest")
    q1 = q1.reshape(B, -1, H, DK).transpose(0, 2, 1, 3)
    q2 = q2.reshape(B, -1, H, DK).transpose(0, 2, 1, 3)

    def attend(q, k, v, m):
        s = jnp.einsum("bhqd,bhkd->bhqk", q, k, precision="highest") / math.sqrt(DK)
        s = jnp.where(m == 0.0, -1e9, s)
        p = jax.nn.softmax(s, axis=-1)
        return jnp.einsum("bhqk,bkd->bhqd", p, v, precision="highest").mean(axis=1)

    w1 = attend(q2, q1, v1, m1)[:, n:, :]
    w2 = attend(q1, q2, v2, m2)[:, n:, :]
    c1 = jnp.concatenate([data1, w2], axis=-1)
    c2 = jnp.concatenate([data2, w1], axis=-1)
    o1 = data1 + jax.nn.relu(jnp.einsum("blk,kd->bld", c1, params["lin0_w"],
                                        precision="highest") + params["lin0_b"])
    o2 = data2 + jax.nn.relu(jnp.einsum("blk,kd->bld", c2, params["lin1_w"],
                                        precision="highest") + params["lin1_b"])
    return o1, o2


if __name__ == "__main__":
    # Small config consistent with the module: dim1 == dim2 == 32, 4 heads, 3 "none" slots.
    B, L1, L2, D = 2, 10, 7, 32
    NUM_ATTN, NUM_NONE = 4, 3

    key = jax.random.PRNGKey(0)
    ks = jax.random.split(key, 10)
    data1 = jax.random.normal(ks[0], (B, L1, D), jnp.float32)
    data2 = jax.random.normal(ks[1], (B, L2, D), jnp.float32)
    mask1 = (jax.random.uniform(ks[2], (B, L1)) > 0.2).astype(jnp.float32)
    mask2 = (jax.random.uniform(ks[3], (B, L2)) > 0.2).astype(jnp.float32)

    params = {
        "nones":  0.1 * jax.random.normal(ks[4], (NUM_NONE, D), jnp.float32),
        "wq1":    0.1 * jax.random.normal(ks[5], (D, D), jnp.float32),       # q = x @ W
        "wq2":    0.1 * jax.random.normal(ks[6], (D, D), jnp.float32),
        "lin0_w": 0.1 * jax.random.normal(ks[7], (2 * D, D), jnp.float32),   # out = x @ W + b
        "lin0_b": 0.01 * jnp.ones((D,), jnp.float32),
        "lin1_w": 0.1 * jax.random.normal(ks[8], (2 * D, D), jnp.float32),
        "lin1_b": 0.01 * jnp.ones((D,), jnp.float32),
    }

    out1, out2 = jax.block_until_ready(
        normal_sublayer(data1, data2, mask1, mask2, params, NUM_ATTN))

    ref1, ref2 = _reference(data1, data2, mask1, mask2, params, NUM_ATTN)
    # bf16 MXU operands (f32 accumulation) + approx softmax reciprocal -> 2e-2 tolerance.
    np.testing.assert_allclose(np.asarray(out1), np.asarray(ref1), rtol=2e-2, atol=2e-2)
    np.testing.assert_allclose(np.asarray(out2), np.asarray(ref2), rtol=2e-2, atol=2e-2)

    print("KERNEL_OK")
</pallas_src>

<mosaic_0001>
module attributes {stable_mosaic.version = 11 : i64} {
  func.func @kernel(%arg0: memref<23x32xbf16, #tpu.memory_space<vmem>>, %arg1: memref<17x32xbf16, #tpu.memory_space<vmem>>, %arg2: memref<20x32xf32, #tpu.memory_space<vmem>>, %arg3: memref<14x32xf32, #tpu.memory_space<vmem>>, %arg4: memref<20x1xf32, #tpu.memory_space<vmem>>, %arg5: memref<14x1xf32, #tpu.memory_space<vmem>>, %arg6: memref<1x23xf32, #tpu.memory_space<vmem>>, %arg7: memref<1x17xf32, #tpu.memory_space<vmem>>, %arg8: memref<32x32xbf16, #tpu.memory_space<vmem>>, %arg9: memref<32x32xbf16, #tpu.memory_space<vmem>>, %arg10: memref<32x32xbf16, #tpu.memory_space<vmem>>, %arg11: memref<32x32xbf16, #tpu.memory_space<vmem>>, %arg12: memref<1x32xf32, #tpu.memory_space<vmem>>, %arg13: memref<32x32xbf16, #tpu.memory_space<vmem>>, %arg14: memref<32x32xbf16, #tpu.memory_space<vmem>>, %arg15: memref<1x32xf32, #tpu.memory_space<vmem>>, %arg16: memref<20x32xf32, #tpu.memory_space<vmem>>, %arg17: memref<14x32xf32, #tpu.memory_space<vmem>>) attributes {dimension_semantics = [], scalar_prefetch = 0 : i64, scratch_operands = 0 : i64, tpu.core_type = #tpu.core_type<tc>} {
    %c0 = arith.constant 0 : index
    %c0_0 = arith.constant 0 : index
    %0 = vector.load %arg0[%c0, %c0_0] : memref<23x32xbf16, #tpu.memory_space<vmem>>, vector<23x32xbf16>
    %c0_1 = arith.constant 0 : index
    %c0_2 = arith.constant 0 : index
    %1 = vector.load %arg1[%c0_1, %c0_2] : memref<17x32xbf16, #tpu.memory_space<vmem>>, vector<17x32xbf16>
    %c0_3 = arith.constant 0 : index
    %c0_4 = arith.constant 0 : index
    %2 = vector.load %arg8[%c0_3, %c0_4] : memref<32x32xbf16, #tpu.memory_space<vmem>>, vector<32x32xbf16>
    %cst = arith.constant dense<0.000000e+00> : vector<23x32xf32>
    %3 = tpu.matmul %0, %2, %cst {dimension_numbers = #tpu.dot_dimension_numbers<[1], [0], [0], [1], [0, 0, 1, 1], [], []>} : vector<23x32xbf16>, vector<32x32xbf16>, vector<23x32xf32> -> vector<23x32xf32>
    %c0_5 = arith.constant 0 : index
    %c0_6 = arith.constant 0 : index
    %4 = vector.load %arg9[%c0_5, %c0_6] : memref<32x32xbf16, #tpu.memory_space<vmem>>, vector<32x32xbf16>
    %cst_7 = arith.constant dense<0.000000e+00> : vector<17x32xf32>
    %5 = tpu.matmul %1, %4, %cst_7 {dimension_numbers = #tpu.dot_dimension_numbers<[1], [0], [0], [1], [0, 0, 1, 1], [], []>} : vector<17x32xbf16>, vector<32x32xbf16>, vector<17x32xf32> -> vector<17x32xf32>
    %c0_8 = arith.constant 0 : index
    %c0_9 = arith.constant 0 : index
    %6 = vector.load %arg4[%c0_8, %c0_9] : memref<20x1xf32, #tpu.memory_space<vmem>>, vector<20x1xf32>
    %c0_10 = arith.constant 0 : index
    %c0_11 = arith.constant 0 : index
    %7 = vector.load %arg7[%c0_10, %c0_11] : memref<1x17xf32, #tpu.memory_space<vmem>>, vector<1x17xf32>
    %8 = vector.extract_strided_slice %3 {offsets = [0, 0], sizes = [20, 32], strides = [1, 1]} : vector<23x32xf32> to vector<20x32xf32>
    %9 = arith.truncf %8 : vector<20x32xf32> to vector<20x32xbf16>
    %10 = vector.shape_cast %9 : vector<20x32xbf16> to vector<1x20x32xbf16>
    %11 = vector.shape_cast %10 : vector<1x20x32xbf16> to vector<1x20x32xbf16>
    %12 = vector.broadcast %11 : vector<1x20x32xbf16> to vector<4x20x32xbf16>
    %13 = tpu.iota {dimensions = array<i32: 0>} : vector<4x17x32xi32>
    %14 = tpu.iota {dimensions = array<i32: 2>} : vector<4x17x32xi32>
    %c8_i32 = arith.constant 8 : i32
    %15 = vector.broadcast %c8_i32 : i32 to vector<4x17x32xi32>
    %16 = arith.muli %13, %15 : vector<4x17x32xi32>
    %17 = arith.cmpi sge, %14, %16 : vector<4x17x32xi32>
    %c8_i32_12 = arith.constant 8 : i32
    %18 = vector.broadcast %c8_i32_12 : i32 to vector<4x17x32xi32>
    %19 = arith.muli %13, %18 : vector<4x17x32xi32>
    %c8_i32_13 = arith.constant 8 : i32
    %20 = vector.broadcast %c8_i32_13 : i32 to vector<4x17x32xi32>
    %21 = arith.addi %19, %20 : vector<4x17x32xi32>
    %22 = arith.cmpi slt, %14, %21 : vector<4x17x32xi32>
    %23 = arith.andi %17, %22 : vector<4x17x32xi1>
    %24 = vector.shape_cast %5 : vector<17x32xf32> to vector<1x17x32xf32>
    %25 = vector.shape_cast %24 : vector<1x17x32xf32> to vector<1x17x32xf32>
    %26 = vector.broadcast %25 : vector<1x17x32xf32> to vector<4x17x32xf32>
    %cst_14 = arith.constant 0.000000e+00 : f32
    %27 = vector.broadcast %cst_14 : f32 to vector<4x17x32xf32>
    %28 = arith.select %23, %26, %27 : vector<4x17x32xi1>, vector<4x17x32xf32>
    %29 = arith.truncf %28 : vector<4x17x32xf32> to vector<4x17x32xbf16>
    "tpu.trace_start"() <{level = 10 : i32, message = "hqd,hkd->hqk"}> : () -> ()
    %cst_15 = arith.constant dense<0.000000e+00> : vector<4x20x17xf32>
    %30 = tpu.matmul %12, %29, %cst_15 {dimension_numbers = #tpu.dot_dimension_numbers<[2], [2], [1], [1], [0, 0, 0, 1, 1, 1], [0], [0]>} : vector<4x20x32xbf16>, vector<4x17x32xbf16>, vector<4x20x17xf32> -> vector<4x20x17xf32>
    "tpu.trace_stop"() : () -> ()
    %31 = vector.broadcast %7 : vector<1x17xf32> to vector<20x17xf32>
    %32 = vector.broadcast %6 : vector<20x1xf32> to vector<20x17xf32>
    %33 = arith.cmpf oeq, %31, %32 : vector<20x17xf32>
    %cst_16 = arith.constant -2.000000e+00 : f32
    %34 = vector.broadcast %cst_16 : f32 to vector<1x17xf32>
    %35 = arith.cmpf oeq, %7, %34 : vector<1x17xf32>
    %36 = vector.broadcast %35 : vector<1x17xi1> to vector<20x17xi1>
    %37 = arith.ori %33, %36 : vector<20x17xi1>
    %38 = vector.shape_cast %37 : vector<20x17xi1> to vector<1x20x17xi1>
    %39 = vector.shape_cast %38 : vector<1x20x17xi1> to vector<1x20x17xi1>
    %40 = vector.broadcast %39 : vector<1x20x17xi1> to vector<4x20x17xi1>
    %cst_17 = arith.constant -1.000000e+09 : f32
    %41 = vector.broadcast %cst_17 : f32 to vector<4x20x17xf32>
    %42 = arith.select %40, %30, %41 : vector<4x20x17xi1>, vector<4x20x17xf32>
    %cst_18 = arith.constant dense<0xFF800000> : vector<4x20xf32>
    %43 = vector.multi_reduction <maximumf>, %42, %cst_18 [2] : vector<4x20x17xf32> to vector<4x20xf32>
    %44 = vector.shape_cast %43 : vector<4x20xf32> to vector<4x20x1xf32>
    %45 = vector.broadcast %44 : vector<4x20x1xf32> to vector<4x20x17xf32>
    %46 = arith.subf %42, %45 : vector<4x20x17xf32>
    %47 = math.exp %46 : vector<4x20x17xf32>
    %cst_19 = arith.constant dense<0.000000e+00> : vector<4x20xf32>
    %48 = vector.multi_reduction <add>, %47, %cst_19 [2] : vector<4x20x17xf32> to vector<4x20xf32>
    %49 = vector.shape_cast %48 : vector<4x20xf32> to vector<4x20x1xf32>
    %50 = tpu.reciprocal %49 {approx = true} : vector<4x20x1xf32> -> vector<4x20x1xf32>
    %cst_20 = arith.constant 2.500000e-01 : f32
    %51 = vector.broadcast %cst_20 : f32 to vector<4x20x1xf32>
    %52 = arith.mulf %50, %51 : vector<4x20x1xf32>
    %53 = vector.broadcast %52 : vector<4x20x1xf32> to vector<4x20x17xf32>
    %54 = arith.mulf %47, %53 : vector<4x20x17xf32>
    %cst_21 = arith.constant dense<0.000000e+00> : vector<20x17xf32>
    %55 = vector.multi_reduction <add>, %54, %cst_21 [0] : vector<4x20x17xf32> to vector<20x17xf32>
    %56 = arith.truncf %55 : vector<20x17xf32> to vector<20x17xbf16>
    %cst_22 = arith.constant dense<0.000000e+00> : vector<20x32xf32>
    %57 = tpu.matmul %56, %1, %cst_22 {dimension_numbers = #tpu.dot_dimension_numbers<[1], [0], [0], [1], [0, 0, 1, 1], [], []>} : vector<20x17xbf16>, vector<17x32xbf16>, vector<20x32xf32> -> vector<20x32xf32>
    %c0_23 = arith.constant 0 : index
    %c0_24 = arith.constant 0 : index
    %58 = vector.load %arg5[%c0_23, %c0_24] : memref<14x1xf32, #tpu.memory_space<vmem>>, vector<14x1xf32>
    %c0_25 = arith.constant 0 : index
    %c0_26 = arith.constant 0 : index
    %59 = vector.load %arg6[%c0_25, %c0_26] : memref<1x23xf32, #tpu.memory_space<vmem>>, vector<1x23xf32>
    %60 = vector.extract_strided_slice %5 {offsets = [0, 0], sizes = [14, 32], strides = [1, 1]} : vector<17x32xf32> to vector<14x32xf32>
    %61 = arith.truncf %60 : vector<14x32xf32> to vector<14x32xbf16>
    %62 = vector.shape_cast %61 : vector<14x32xbf16> to vector<1x14x32xbf16>
    %63 = vector.shape_cast %62 : vector<1x14x32xbf16> to vector<1x14x32xbf16>
    %64 = vector.broadcast %63 : vector<1x14x32xbf16> to vector<4x14x32xbf16>
    %65 = tpu.iota {dimensions = array<i32: 0>} : vector<4x23x32xi32>
    %66 = tpu.iota {dimensions = array<i32: 2>} : vector<4x23x32xi32>
    %c8_i32_27 = arith.constant 8 : i32
    %67 = vector.broadcast %c8_i32_27 : i32 to vector<4x23x32xi32>
    %68 = arith.muli %65, %67 : vector<4x23x32xi32>
    %69 = arith.cmpi sge, %66, %68 : vector<4x23x32xi32>
    %c8_i32_28 = arith.constant 8 : i32
    %70 = vector.broadcast %c8_i32_28 : i32 to vector<4x23x32xi32>
    %71 = arith.muli %65, %70 : vector<4x23x32xi32>
    %c8_i32_29 = arith.constant 8 : i32
    %72 = vector.broadcast %c8_i32_29 : i32 to vector<4x23x32xi32>
    %73 = arith.addi %71, %72 : vector<4x23x32xi32>
    %74 = arith.cmpi slt, %66, %73 : vector<4x23x32xi32>
    %75 = arith.andi %69, %74 : vector<4x23x32xi1>
    %76 = vector.shape_cast %3 : vector<23x32xf32> to vector<1x23x32xf32>
    %77 = vector.shape_cast %76 : vector<1x23x32xf32> to vector<1x23x32xf32>
    %78 = vector.broadcast %77 : vector<1x23x32xf32> to vector<4x23x32xf32>
    %cst_30 = arith.constant 0.000000e+00 : f32
    %79 = vector.broadcast %cst_30 : f32 to vector<4x23x32xf32>
    %80 = arith.select %75, %78, %79 : vector<4x23x32xi1>, vector<4x23x32xf32>
    %81 = arith.truncf %80 : vector<4x23x32xf32> to vector<4x23x32xbf16>
    "tpu.trace_start"() <{level = 10 : i32, message = "hqd,hkd->hqk"}> : () -> ()
    %cst_31 = arith.constant dense<0.000000e+00> : vector<4x14x23xf32>
    %82 = tpu.matmul %64, %81, %cst_31 {dimension_numbers = #tpu.dot_dimension_numbers<[2], [2], [1], [1], [0, 0, 0, 1, 1, 1], [0], [0]>} : vector<4x14x32xbf16>, vector<4x23x32xbf16>, vector<4x14x23xf32> -> vector<4x14x23xf32>
    "tpu.trace_stop"() : () -> ()
    %83 = vector.broadcast %59 : vector<1x23xf32> to vector<14x23xf32>
    %84 = vector.broadcast %58 : vector<14x1xf32> to vector<14x23xf32>
    %85 = arith.cmpf oeq, %83, %84 : vector<14x23xf32>
    %cst_32 = arith.constant -2.000000e+00 : f32
    %86 = vector.broadcast %cst_32 : f32 to vector<1x23xf32>
    %87 = arith.cmpf oeq, %59, %86 : vector<1x23xf32>
    %88 = vector.broadcast %87 : vector<1x23xi1> to vector<14x23xi1>
    %89 = arith.ori %85, %88 : vector<14x23xi1>
    %90 = vector.shape_cast %89 : vector<14x23xi1> to vector<1x14x23xi1>
    %91 = vector.shape_cast %90 : vector<1x14x23xi1> to vector<1x14x23xi1>
    %92 = vector.broadcast %91 : vector<1x14x23xi1> to vector<4x14x23xi1>
    %cst_33 = arith.constant -1.000000e+09 : f32
    %93 = vector.broadcast %cst_33 : f32 to vector<4x14x23xf32>
    %94 = arith.select %92, %82, %93 : vector<4x14x23xi1>, vector<4x14x23xf32>
    %cst_34 = arith.constant dense<0xFF800000> : vector<4x14xf32>
    %95 = vector.multi_reduction <maximumf>, %94, %cst_34 [2] : vector<4x14x23xf32> to vector<4x14xf32>
    %96 = vector.shape_cast %95 : vector<4x14xf32> to vector<4x14x1xf32>
    %97 = vector.broadcast %96 : vector<4x14x1xf32> to vector<4x14x23xf32>
    %98 = arith.subf %94, %97 : vector<4x14x23xf32>
    %99 = math.exp %98 : vector<4x14x23xf32>
    %cst_35 = arith.constant dense<0.000000e+00> : vector<4x14xf32>
    %100 = vector.multi_reduction <add>, %99, %cst_35 [2] : vector<4x14x23xf32> to vector<4x14xf32>
    %101 = vector.shape_cast %100 : vector<4x14xf32> to vector<4x14x1xf32>
    %102 = tpu.reciprocal %101 {approx = true} : vector<4x14x1xf32> -> vector<4x14x1xf32>
    %cst_36 = arith.constant 2.500000e-01 : f32
    %103 = vector.broadcast %cst_36 : f32 to vector<4x14x1xf32>
    %104 = arith.mulf %102, %103 : vector<4x14x1xf32>
    %105 = vector.broadcast %104 : vector<4x14x1xf32> to vector<4x14x23xf32>
    %106 = arith.mulf %99, %105 : vector<4x14x23xf32>
    %cst_37 = arith.constant dense<0.000000e+00> : vector<14x23xf32>
    %107 = vector.multi_reduction <add>, %106, %cst_37 [0] : vector<4x14x23xf32> to vector<14x23xf32>
    %108 = arith.truncf %107 : vector<14x23xf32> to vector<14x23xbf16>
    %cst_38 = arith.constant dense<0.000000e+00> : vector<14x32xf32>
    %109 = tpu.matmul %108, %0, %cst_38 {dimension_numbers = #tpu.dot_dimension_numbers<[1], [0], [0], [1], [0, 0, 1, 1], [], []>} : vector<14x23xbf16>, vector<23x32xbf16>, vector<14x32xf32> -> vector<14x32xf32>
    %110 = vector.extract_strided_slice %0 {offsets = [0, 0], sizes = [20, 32], strides = [1, 1]} : vector<23x32xbf16> to vector<20x32xbf16>
    %c0_39 = arith.constant 0 : index
    %c0_40 = arith.constant 0 : index
    %111 = vector.load %arg10[%c0_39, %c0_40] : memref<32x32xbf16, #tpu.memory_space<vmem>>, vector<32x32xbf16>
    %cst_41 = arith.constant dense<0.000000e+00> : vector<20x32xf32>
    %112 = tpu.matmul %110, %111, %cst_41 {dimension_numbers = #tpu.dot_dimension_numbers<[1], [0], [0], [1], [0, 0, 1, 1], [], []>} : vector<20x32xbf16>, vector<32x32xbf16>, vector<20x32xf32> -> vector<20x32xf32>
    %113 = arith.truncf %57 : vector<20x32xf32> to vector<20x32xbf16>
    %c0_42 = arith.constant 0 : index
    %c0_43 = arith.constant 0 : index
    %114 = vector.load %arg11[%c0_42, %c0_43] : memref<32x32xbf16, #tpu.memory_space<vmem>>, vector<32x32xbf16>
    %cst_44 = arith.constant dense<0.000000e+00> : vector<20x32xf32>
    %115 = tpu.matmul %113, %114, %cst_44 {dimension_numbers = #tpu.dot_dimension_numbers<[1], [0], [0], [1], [0, 0, 1, 1], [], []>} : vector<20x32xbf16>, vector<32x32xbf16>, vector<20x32xf32> -> vector<20x32xf32>
    %116 = arith.addf %112, %115 : vector<20x32xf32>
    %c0_45 = arith.constant 0 : index
    %c0_46 = arith.constant 0 : index
    %117 = vector.load %arg12[%c0_45, %c0_46] : memref<1x32xf32, #tpu.memory_space<vmem>>, vector<1x32xf32>
    %118 = vector.broadcast %117 : vector<1x32xf32> to vector<20x32xf32>
    %119 = arith.addf %116, %118 : vector<20x32xf32>
    %c0_47 = arith.constant 0 : index
    %c0_48 = arith.constant 0 : index
    %120 = vector.load %arg2[%c0_47, %c0_48] : memref<20x32xf32, #tpu.memory_space<vmem>>, vector<20x32xf32>
    %cst_49 = arith.constant 0.000000e+00 : f32
    %121 = vector.broadcast %cst_49 : f32 to vector<20x32xf32>
    %122 = arith.maximumf %119, %121 : vector<20x32xf32>
    %123 = arith.addf %120, %122 : vector<20x32xf32>
    %c0_50 = arith.constant 0 : index
    %c0_51 = arith.constant 0 : index
    %124 = vector.load %arg16[%c0_50, %c0_51] : memref<20x32xf32, #tpu.memory_space<vmem>>, vector<20x32xf32>
    tpu.vector_store %arg16[%c0_50, %c0_51], %123 {strides = array<i32>} : memref<20x32xf32, #tpu.memory_space<vmem>>, vector<20x32xf32>,
    %125 = vector.extract_strided_slice %1 {offsets = [0, 0], sizes = [14, 32], strides = [1, 1]} : vector<17x32xbf16> to vector<14x32xbf16>
    %c0_52 = arith.constant 0 : index
    %c0_53 = arith.constant 0 : index
    %126 = vector.load %arg13[%c0_52, %c0_53] : memref<32x32xbf16, #tpu.memory_space<vmem>>, vector<32x32xbf16>
    %cst_54 = arith.constant dense<0.000000e+00> : vector<14x32xf32>
    %127 = tpu.matmul %125, %126, %cst_54 {dimension_numbers = #tpu.dot_dimension_numbers<[1], [0], [0], [1], [0, 0, 1, 1], [], []>} : vector<14x32xbf16>, vector<32x32xbf16>, vector<14x32xf32> -> vector<14x32xf32>
    %128 = arith.truncf %109 : vector<14x32xf32> to vector<14x32xbf16>
    %c0_55 = arith.constant 0 : index
    %c0_56 = arith.constant 0 : index
    %129 = vector.load %arg14[%c0_55, %c0_56] : memref<32x32xbf16, #tpu.memory_space<vmem>>, vector<32x32xbf16>
    %cst_57 = arith.constant dense<0.000000e+00> : vector<14x32xf32>
    %130 = tpu.matmul %128, %129, %cst_57 {dimension_numbers = #tpu.dot_dimension_numbers<[1], [0], [0], [1], [0, 0, 1, 1], [], []>} : vector<14x32xbf16>, vector<32x32xbf16>, vector<14x32xf32> -> vector<14x32xf32>
    %131 = arith.addf %127, %130 : vector<14x32xf32>
    %c0_58 = arith.constant 0 : index
    %c0_59 = arith.constant 0 : index
    %132 = vector.load %arg15[%c0_58, %c0_59] : memref<1x32xf32, #tpu.memory_space<vmem>>, vector<1x32xf32>
    %133 = vector.broadcast %132 : vector<1x32xf32> to vector<14x32xf32>
    %134 = arith.addf %131, %133 : vector<14x32xf32>
    %c0_60 = arith.constant 0 : index
    %c0_61 = arith.constant 0 : index
    %135 = vector.load %arg3[%c0_60, %c0_61] : memref<14x32xf32, #tpu.memory_space<vmem>>, vector<14x32xf32>
    %cst_62 = arith.constant 0.000000e+00 : f32
    %136 = vector.broadcast %cst_62 : f32 to vector<14x32xf32>
    %137 = arith.maximumf %134, %136 : vector<14x32xf32>
    %138 = arith.addf %135, %137 : vector<14x32xf32>
    %c0_63 = arith.constant 0 : index
    %c0_64 = arith.constant 0 : index
    %139 = vector.load %arg17[%c0_63, %c0_64] : memref<14x32xf32, #tpu.memory_space<vmem>>, vector<14x32xf32>
    tpu.vector_store %arg17[%c0_63, %c0_64], %138 {strides = array<i32>} : memref<14x32xf32, #tpu.memory_space<vmem>>, vector<14x32xf32>,
    return
  }
}

</mosaic_0001>

<llo_original>
// kernel: tpu_custom_call.1
$region0: #{tpu_custom_call.1}
  #allocation0 [shape = 'u32[]', space=smem, size = 0x4, offset = 0x4, fixed_abs, tag = 'smem constant byte address 0x4 - core index']
  #allocation1 [shape = 'u32[144,128]{1,0:T(1,128)}', space=vmem, size = 0x12000, scoped, tag = 'internal scratch']
  %s0 = inlined_call_operand.hbm [shape: bf16[23,32], index: 0, kind: input, shape index: {}]
  %s1 = inlined_call_operand.hbm [shape: bf16[17,32], index: 1, kind: input, shape index: {}]
  %s2 = inlined_call_operand.vmem [shape: f32[20,32], index: 2, kind: input, shape index: {}]
  %s3 = inlined_call_operand.vmem [shape: f32[14,32], index: 3, kind: input, shape index: {}]
  %s4 = inlined_call_operand.vmem [shape: f32[20,1], index: 4, kind: input, shape index: {}]
  %s5 = inlined_call_operand.vmem [shape: f32[14,1], index: 5, kind: input, shape index: {}]
  %s6 = inlined_call_operand.hbm [shape: f32[1,23], index: 6, kind: input, shape index: {}]
  %s7 = inlined_call_operand.hbm [shape: f32[1,17], index: 7, kind: input, shape index: {}]
  %s8 = inlined_call_operand.vmem [shape: bf16[32,32], index: 8, kind: input, shape index: {}]
  %s9 = inlined_call_operand.vmem [shape: bf16[32,32], index: 9, kind: input, shape index: {}]
  %s10 = inlined_call_operand.hbm [shape: bf16[32,32], index: 10, kind: input, shape index: {}]
  %s11 = inlined_call_operand.hbm [shape: bf16[32,32], index: 11, kind: input, shape index: {}]
  %s12 = inlined_call_operand.vmem [shape: f32[1,32], index: 12, kind: input, shape index: {}]
  %s13 = inlined_call_operand.vmem [shape: bf16[32,32], index: 13, kind: input, shape index: {}]
  %s14 = inlined_call_operand.hbm [shape: bf16[32,32], index: 14, kind: input, shape index: {}]
  %s15 = inlined_call_operand.vmem [shape: f32[1,32], index: 15, kind: input, shape index: {}]
  %s16 = inlined_call_operand.hbm [shape: f32[20,32], index: 16, kind: output, shape index: {0}]
  %s17 = inlined_call_operand.hbm [shape: f32[14,32], index: 17, kind: output, shape index: {1}]
  %18 = xla_tuple %s16, %s17
  %s19 = sld [smem:[#allocation0]]
  $region110: #{tpu_custom_call.1} parent=0
    _
  %s21 = ssub.s32 1, %s19
  %s22 = scalar_select 0, %s21, %s19
  $region1: #{tpu_custom_call.1} parent=0
    #allocation2 [shape = 'u8[6144]{0}', space=vmem, size = 0x1800, scoped, tag = 'input window, operand 0, single buffered']
    #allocation3 [shape = 's32[1]{0}', space=sflag, size = 0x4, scoped, tag = 'scoped memory for tpu_custom_call.1']
    #allocation4 [shape = 's32[1]{0}', space=sflag, size = 0x4, scoped, tag = 'scoped memory for tpu_custom_call.1']
    #allocation5 [shape = 'u8[6144]{0}', space=vmem, size = 0x1800, scoped, tag = 'input window, operand 1, single buffered']
    #allocation6 [shape = 's32[1]{0}', space=sflag, size = 0x4, scoped, tag = 'scoped memory for tpu_custom_call.1']
    #allocation7 [shape = 'u8[512]{0}', space=vmem, size = 0x400, scoped, tag = 'input window, operand 6, single buffered']
    #allocation8 [shape = 'u8[512]{0}', space=vmem, size = 0x400, scoped, tag = 'input window, operand 7, single buffered']
    #allocation9 [shape = 's32[1]{0}', space=sflag, size = 0x4, scoped, tag = 'scoped memory for tpu_custom_call.1']
    #allocation10 [shape = 'u8[8192]{0}', space=vmem, size = 0x2000, scoped, tag = 'input window, operand 10, single buffered']
    #allocation11 [shape = 'u8[8192]{0}', space=vmem, size = 0x2000, scoped, tag = 'input window, operand 11, single buffered']
    #allocation12 [shape = 's32[1]{0}', space=sflag, size = 0x4, scoped, tag = 'scoped memory for tpu_custom_call.1']
    #allocation13 [shape = 'u8[8192]{0}', space=vmem, size = 0x2000, scoped, tag = 'input window, operand 14, single buffered']
    #allocation14 [shape = 'u8[12288]{0}', space=vmem, size = 0x3000, scoped, tag = 'output window, operand 0, single buffered']
    #allocation15 [shape = 'u8[8192]{0}', space=vmem, size = 0x2000, scoped, tag = 'output window, operand 1, single buffered']
    #allocation16 [shape = 's32[1]{0}', space=sflag, size = 0x4, scoped, tag = 'scoped memory for tpu_custom_call.1']
    %23 = vsyncpa [#allocation3], 0
    %24 = vsyncpa [#allocation6], 0
    %25 = vsyncpa [#allocation9], 0
    %26 = vsyncpa [#allocation12], 0
    %27 = vsyncpa [#allocation4], 0
    %28 = vsyncpa [#allocation16], 0
    // Predicated region
    $region2: #{tpu_custom_call.1} parent=1 // pred_check
      _
    $region3: #{tpu_custom_call.1} parent=1 // pred_check_branch
      %30 = sbr.rel (0) target = $region5
    $region4: #{tpu_custom_call.1} parent=1 // pred_region
      %s32 = ssub.s32 192, 192
      %33 = vsyncadd [#allocation3], %s32
      %s34 = sshll.u32 [#allocation2], 4
      %s35 = int_to_ptr.vmem [resolvable:$true] %s34
      %40 = dma.hbm_to_vmem [thread:$0]  %s0, 192, %s35, [#allocation3], 64, 64, 4
    $region5: #{tpu_custom_call.1} parent=1 // pred_fallthru
      _
    // Predicated region
    $region6: #{tpu_custom_call.1} parent=1 // pred_check
      _
    $region7: #{tpu_custom_call.1} parent=1 // pred_check_branch
      %42 = sbr.rel (0) target = $region9
    $region8: #{tpu_custom_call.1} parent=1 // pred_region
      %s44 = ssub.s32 192, 192
      %45 = vsyncadd [#allocation6], %s44
      %s46 = sshll.u32 [#allocation5], 4
      %s47 = int_to_ptr.vmem [resolvable:$true] %s46
      %52 = dma.hbm_to_vmem [thread:$0]  %s1, 192, %s47, [#allocation6], 64, 64, 4
    $region9: #{tpu_custom_call.1} parent=1 // pred_fallthru
      _
    // Predicated region
    $region10: #{tpu_custom_call.1} parent=1 // pred_check
      _
    $region11: #{tpu_custom_call.1} parent=1 // pred_check_branch
      %54 = sbr.rel (0) target = $region13
    $region12: #{tpu_custom_call.1} parent=1 // pred_region
      _
    $region13: #{tpu_custom_call.1} parent=1 // pred_fallthru
      _
    // Predicated region
    $region14: #{tpu_custom_call.1} parent=1 // pred_check
      _
    $region15: #{tpu_custom_call.1} parent=1 // pred_check_branch
      %56 = sbr.rel (0) target = $region17
    $region16: #{tpu_custom_call.1} parent=1 // pred_region
      _
    $region17: #{tpu_custom_call.1} parent=1 // pred_fallthru
      _
    // Predicated region
    $region18: #{tpu_custom_call.1} parent=1 // pred_check
      _
    $region19: #{tpu_custom_call.1} parent=1 // pred_check_branch
      %58 = sbr.rel (0) target = $region21
    $region20: #{tpu_custom_call.1} parent=1 // pred_region
      _
    $region21: #{tpu_custom_call.1} parent=1 // pred_fallthru
      _
    // Predicated region
    $region22: #{tpu_custom_call.1} parent=1 // pred_check
      _
    $region23: #{tpu_custom_call.1} parent=1 // pred_check_branch
      %60 = sbr.rel (0) target = $region25
    $region24: #{tpu_custom_call.1} parent=1 // pred_region
      _
    $region25: #{tpu_custom_call.1} parent=1 // pred_fallthru
      _
    // Predicated region
    $region26: #{tpu_custom_call.1} parent=1 // pred_check
      _
    $region27: #{tpu_custom_call.1} parent=1 // pred_check_branch
      %62 = sbr.rel (0) target = $region29
    $region28: #{tpu_custom_call.1} parent=1 // pred_region
      %s64 = ssub.s32 16, 16
      %65 = vsyncadd [#allocation6], %s64
      %s67 = sshll.u32 [#allocation7], 4
      %s68 = int_to_ptr.vmem [resolvable:$true] %s67
      %70 = dma.hbm_to_vmem [thread:$0]  %s6, 16, %s68, [#allocation6]
    $region29: #{tpu_custom_call.1} parent=1 // pred_fallthru
      _
    // Predicated region
    $region30: #{tpu_custom_call.1} parent=1 // pred_check
      _
    $region31: #{tpu_custom_call.1} parent=1 // pred_check_branch
      %72 = sbr.rel (0) target = $region33
    $region32: #{tpu_custom_call.1} parent=1 // pred_region
      %s74 = ssub.s32 16, 16
      %75 = vsyncadd [#allocation9], %s74
      %s77 = sshll.u32 [#allocation8], 4
      %s78 = int_to_ptr.vmem [resolvable:$true] %s77
      %80 = dma.hbm_to_vmem [thread:$0]  %s7, 16, %s78, [#allocation9]
    $region33: #{tpu_custom_call.1} parent=1 // pred_fallthru
      _
    // Predicated region
    $region34: #{tpu_custom_call.1} parent=1 // pred_check
      _
    $region35: #{tpu_custom_call.1} parent=1 // pred_check_branch
      %82 = sbr.rel (0) target = $region37
    $region36: #{tpu_custom_call.1} parent=1 // pred_region
      _
    $region37: #{tpu_custom_call.1} parent=1 // pred_fallthru
      _
    // Predicated region
    $region38: #{tpu_custom_call.1} parent=1 // pred_check
      _
    $region39: #{tpu_custom_call.1} parent=1 // pred_check_branch
      %84 = sbr.rel (0) target = $region41
    $region40: #{tpu_custom_call.1} parent=1 // pred_region
      _
    $region41: #{tpu_custom_call.1} parent=1 // pred_fallthru
      _
    // Predicated region
    $region42: #{tpu_custom_call.1} parent=1 // pred_check
      _
    $region43: #{tpu_custom_call.1} parent=1 // pred_check_branch
      %86 = sbr.rel (0) target = $region45
    $region44: #{tpu_custom_call.1} parent=1 // pred_region
      %s88 = ssub.s32 256, 256
      %89 = vsyncadd [#allocation9], %s88
      %s90 = sshll.u32 [#allocation10], 4
      %s91 = int_to_ptr.vmem [resolvable:$true] %s90
      %96 = dma.hbm_to_vmem [thread:$0]  %s10, 256, %s91, [#allocation9], 64, 64, 4
    $region45: #{tpu_custom_call.1} parent=1 // pred_fallthru
      _
    // Predicated region
    $region46: #{tpu_custom_call.1} parent=1 // pred_check
      _
    $region47: #{tpu_custom_call.1} parent=1 // pred_check_branch
      %98 = sbr.rel (0) target = $region49
    $region48: #{tpu_custom_call.1} parent=1 // pred_region
      %s100 = ssub.s32 256, 256
      %101 = vsyncadd [#allocation12], %s100
      %s102 = sshll.u32 [#allocation11], 4
      %s103 = int_to_ptr.vmem [resolvable:$true] %s102
      %108 = dma.hbm_to_vmem [thread:$0]  %s11, 256, %s103, [#allocation12], 64, 64, 4
    $region49: #{tpu_custom_call.1} parent=1 // pred_fallthru
      _
    // Predicated region
    $region50: #{tpu_custom_call.1} parent=1 // pred_check
      _
    $region51: #{tpu_custom_call.1} parent=1 // pred_check_branch
      %110 = sbr.rel (0) target = $region53
    $region52: #{tpu_custom_call.1} parent=1 // pred_region
      _
    $region53: #{tpu_custom_call.1} parent=1 // pred_fallthru
      _
    // Predicated region
    $region54: #{tpu_custom_call.1} parent=1 // pred_check
      _
    $region55: #{tpu_custom_call.1} parent=1 // pred_check_branch
      %112 = sbr.rel (0) target = $region57
    $region56: #{tpu_custom_call.1} parent=1 // pred_region
      _
    $region57: #{tpu_custom_call.1} parent=1 // pred_fallthru
      _
    // Predicated region
    $region58: #{tpu_custom_call.1} parent=1 // pred_check
      _
    $region59: #{tpu_custom_call.1} parent=1 // pred_check_branch
      %114 = sbr.rel (0) target = $region61
    $region60: #{tpu_custom_call.1} parent=1 // pred_region
      %s116 = ssub.s32 256, 256
      %117 = vsyncadd [#allocation12], %s116
      %s118 = sshll.u32 [#allocation13], 4
      %s119 = int_to_ptr.vmem [resolvable:$true] %s118
      %124 = dma.hbm_to_vmem [thread:$0]  %s14, 256, %s119, [#allocation12], 64, 64, 4
    $region61: #{tpu_custom_call.1} parent=1 // pred_fallthru
      _
    // Predicated region
    $region62: #{tpu_custom_call.1} parent=1 // pred_check
      _
    $region63: #{tpu_custom_call.1} parent=1 // pred_check_branch
      %126 = sbr.rel (0) target = $region65
    $region64: #{tpu_custom_call.1} parent=1 // pred_region
      _
    $region65: #{tpu_custom_call.1} parent=1 // pred_fallthru
      _
    // Predicated region
    $region66: #{tpu_custom_call.1} parent=1 // pred_check
      _
    $region67: #{tpu_custom_call.1} parent=1 // pred_check_branch
      %128 = sbr.rel (0) target = $region69
    $region68: #{tpu_custom_call.1} parent=1 // pred_region
      %129 = dma.done [#allocation3], 192
    $region69: #{tpu_custom_call.1} parent=1 // pred_fallthru
      _
    // Predicated region
    $region70: #{tpu_custom_call.1} parent=1 // pred_check
      _
    $region71: #{tpu_custom_call.1} parent=1 // pred_check_branch
      %131 = sbr.rel (0) target = $region73
    $region72: #{tpu_custom_call.1} parent=1 // pred_region
      %132 = dma.done [#allocation6], 192
    $region73: #{tpu_custom_call.1} parent=1 // pred_fallthru
      _
    // Predicated region
    $region74: #{tpu_custom_call.1} parent=1 // pred_check
      _
    $region75: #{tpu_custom_call.1} parent=1 // pred_check_branch
      %134 = sbr.rel (0) target = $region77
    $region76: #{tpu_custom_call.1} parent=1 // pred_region
      %135 = dma.done [#allocation6], 16
    $region77: #{tpu_custom_call.1} parent=1 // pred_fallthru
      _
    // Predicated region
    $region78: #{tpu_custom_call.1} parent=1 // pred_check
      _
    $region79: #{tpu_custom_call.1} parent=1 // pred_check_branch
      %137 = sbr.rel (0) target = $region81
    $region80: #{tpu_custom_call.1} parent=1 // pred_region
      %138 = dma.done [#allocation9], 16
    $region81: #{tpu_custom_call.1} parent=1 // pred_fallthru
      _
    // Predicated region
    $region82: #{tpu_custom_call.1} parent=1 // pred_check
      _
    $region83: #{tpu_custom_call.1} parent=1 // pred_check_branch
      %140 = sbr.rel (0) target = $region85
    $region84: #{tpu_custom_call.1} parent=1 // pred_region
      %141 = dma.done [#allocation9], 256
    $region85: #{tpu_custom_call.1} parent=1 // pred_fallthru
      _
    // Predicated region
    $region86: #{tpu_custom_call.1} parent=1 // pred_check
      _
    $region87: #{tpu_custom_call.1} parent=1 // pred_check_branch
      %143 = sbr.rel (0) target = $region89
    $region88: #{tpu_custom_call.1} parent=1 // pred_region
      %144 = dma.done [#allocation12], 256
    $region89: #{tpu_custom_call.1} parent=1 // pred_fallthru
      _
    // Predicated region
    $region90: #{tpu_custom_call.1} parent=1 // pred_check
      _
    $region91: #{tpu_custom_call.1} parent=1 // pred_check_branch
      %146 = sbr.rel (0) target = $region93
    $region92: #{tpu_custom_call.1} parent=1 // pred_region
      %147 = dma.done [#allocation12], 256
    $region93: #{tpu_custom_call.1} parent=1 // pred_fallthru
      _
    %v149 = vld [vmem:[#allocation2] sm:$0xf]
    %v150 = vld [vmem:[#allocation2 + $0x4] sm:$0xf]
    %v151 = vld [vmem:[#allocation2 + $0x8] sm:$0xf]
    %v152 = vld [vmem:[#allocation5] sm:$0xf]
    %v153 = vld [vmem:[#allocation5 + $0x4] sm:$0xf]
    %v154 = vld [vmem:[#allocation5 + $0x8] sm:$0x1]
    %v155 = vld [vmem:[%s8] sm:$0xf]
    %v156 = vld [vmem:[%s8 + $0x4] sm:$0xf]
    %v157 = vld [vmem:[%s8 + $0x8] sm:$0xf]
    %v158 = vld [vmem:[%s8 + $0xc] sm:$0xf]
    %v162 = vunpack.c.l.b16 %v149
    %v163 = vunpack.c.l.b16 %v150
    %v164 = vunpack.c.l.b16 %v151
    %v165 = vpack.c.b16 %v163, %v162
    %v166 = vpack.c.b16 %v164, %v164
    %v171 = vunpack.c.l.b16 %v155
    %v172 = vunpack.c.l.b16 %v156
    %v173 = vunpack.c.l.b16 %v157
    %v174 = vunpack.c.l.b16 %v158
    %v175 = vpack.c.b16 %v172, %v171
    %v176 = vpack.c.b16 %v174, %v173
    %vm179 = vcmask 261120
    %v181 = vsel %vm179, %v165, 0
    %v184 = vsel %vm179, %v166, 0
    %186 = vmatprep.subr.bf16.mxu0 0
    %187 = vmatpush1.bf16.msra.mxu0 %v175
    %188 = vmatprep.subr.bf16.mxu0 0
    %189 = vmatpush1.bf16.msra.mxu0 %v176
    %190 = vmatprep.subr.bf16.mxu0 0
    %191 = vmatpush1.bf16.msra.mxu0 0
    %192 = vmatprep.subr.bf16.mxu0 0
    %193 = vmatpush1.bf16.msra.mxu0 0
    %194 = vmatprep.subr.bf16.mxu0 0
    %195 = vmatpush1.bf16.msra.mxu0 0
    %196 = vmatprep.subr.bf16.mxu0 0
    %197 = vmatpush1.bf16.msra.mxu0 0
    %198 = vmatprep.subr.bf16.mxu0 0
    %199 = vmatpush1.bf16.msra.mxu0 0
    %200 = vmatprep.subr.bf16.mxu0 0
    %201 = vmatpush1.bf16.msra.mxu0 0
    %202 = vmatprep.subr.bf16.mxu0 0
    %203 = vmatpush1.bf16.msra.mxu0 0
    %204 = vmatprep.subr.bf16.mxu0 0
    %205 = vmatpush1.bf16.msra.mxu0 0
    %206 = vmatprep.subr.bf16.mxu0 0
    %207 = vmatpush1.bf16.msra.mxu0 0
    %208 = vmatprep.subr.bf16.mxu0 0
    %209 = vmatpush1.bf16.msra.mxu0 0
    %210 = vmatprep.subr.bf16.mxu0 0
    %211 = vmatpush1.bf16.msra.mxu0 0
    %212 = vmatprep.subr.bf16.mxu0 0
    %213 = vmatpush1.bf16.msra.mxu0 0
    %214 = vmatprep.subr.bf16.mxu0 0
    %215 = vmatpush1.bf16.msra.mxu0 0
    %216 = vmatprep.subr.bf16.mxu0 0
    %217 = vmatpush1.bf16.msra.mxu0 0
    %218 = vmatprep.mubr.bf16.mxu0 0
    %219 = vmatmul.mubr.bf16.gmra.mrb[0].mxu0 %v181
    %v220 = vpop.f32.mrb[0].mxu0
    %v221 = vadd.f32 0.0, %v220
    %v222 = vpop.f32.mrb[0].mxu0
    %v223 = vpop.f32.mrb[0].mxu0
    %v224 = vadd.f32 0.0, %v223
    %v225 = vpop.f32.mrb[0].mxu0
    %226 = vmatprep.mubr.bf16.mxu0 0
    %227 = vmatmul.mubr.bf16.gmra.mrb[0].mxu0 %v184
    %v228 = vpop.f32.mrb[0].mxu0
    %v229 = vadd.f32 0.0, %v228
    %v230 = vpop.f32.mrb[0].mxu0
    %v231 = vpop.f32.mrb[0].mxu0
    %v232 = vpop.f32.mrb[0].mxu0
    %233 = vdwg.mxu0
    %v234 = vld [vmem:[%s9] sm:$0xf]
    %v235 = vld [vmem:[%s9 + $0x4] sm:$0xf]
    %v236 = vld [vmem:[%s9 + $0x8] sm:$0xf]
    %v237 = vld [vmem:[%s9 + $0xc] sm:$0xf]
    %v241 = vunpack.c.l.b16 %v152
    %v242 = vunpack.c.l.b16 %v153
    %v243 = vunpack.c.l.b16 %v154
    %v244 = vpack.c.b16 %v242, %v241
    %v245 = vpack.c.b16 %v243, %v243
    %v250 = vunpack.c.l.b16 %v234
    %v251 = vunpack.c.l.b16 %v235
    %v252 = vunpack.c.l.b16 %v236
    %v253 = vunpack.c.l.b16 %v237
    %v254 = vpack.c.b16 %v251, %v250
    %v255 = vpack.c.b16 %v253, %v252
    %v259 = vsel %vm179, %v244, 0
    %v262 = vsel %vm179, %v245, 0
    %264 = vmatprep.subr.bf16.mxu0 0
    %265 = vmatpush1.bf16.msra.mxu0 %v254
    %266 = vmatprep.subr.bf16.mxu0 0
    %267 = vmatpush1.bf16.msra.mxu0 %v255
    %268 = vmatprep.subr.bf16.mxu0 0
    %269 = vmatpush1.bf16.msra.mxu0 0
    %270 = vmatprep.subr.bf16.mxu0 0
    %271 = vmatpush1.bf16.msra.mxu0 0
    %272 = vmatprep.subr.bf16.mxu0 0
    %273 = vmatpush1.bf16.msra.mxu0 0
    %274 = vmatprep.subr.bf16.mxu0 0
    %275 = vmatpush1.bf16.msra.mxu0 0
    %276 = vmatprep.subr.bf16.mxu0 0
    %277 = vmatpush1.bf16.msra.mxu0 0
    %278 = vmatprep.subr.bf16.mxu0 0
    %279 = vmatpush1.bf16.msra.mxu0 0
    %280 = vmatprep.subr.bf16.mxu0 0
    %281 = vmatpush1.bf16.msra.mxu0 0
    %282 = vmatprep.subr.bf16.mxu0 0
    %283 = vmatpush1.bf16.msra.mxu0 0
    %284 = vmatprep.subr.bf16.mxu0 0
    %285 = vmatpush1.bf16.msra.mxu0 0
    %286 = vmatprep.subr.bf16.mxu0 0
    %287 = vmatpush1.bf16.msra.mxu0 0
    %288 = vmatprep.subr.bf16.mxu0 0
    %289 = vmatpush1.bf16.msra.mxu0 0
    %290 = vmatprep.subr.bf16.mxu0 0
    %291 = vmatpush1.bf16.msra.mxu0 0
    %292 = vmatprep.subr.bf16.mxu0 0
    %293 = vmatpush1.bf16.msra.mxu0 0
    %294 = vmatprep.subr.bf16.mxu0 0
    %295 = vmatpush1.bf16.msra.mxu0 0
    %296 = vmatprep.mubr.bf16.mxu0 0
    %297 = vmatmul.mubr.bf16.gmra.mrb[0].mxu0 %v259
    %v298 = vpop.f32.mrb[0].mxu0
    %v299 = vadd.f32 0.0, %v298
    %v300 = vpop.f32.mrb[0].mxu0
    %v301 = vpop.f32.mrb[0].mxu0
    %v302 = vadd.f32 0.0, %v301
    %v303 = vpop.f32.mrb[0].mxu0
    %304 = vmatprep.mubr.bf16.mxu0 0
    %305 = vmatmul.mubr.bf16.gmra.mrb[0].mxu0 %v262
    %v306 = vpop.f32.mrb[0].mxu0
    %v307 = vadd.f32 0.0, %v306
    %v308 = vpop.f32.mrb[0].mxu0
    %v309 = vpop.f32.mrb[0].mxu0
    %v310 = vpop.f32.mrb[0].mxu0
    %311 = vdwg.mxu0
    %v312 = vld [vmem:[%s4] sm:$0xff]
    %v313 = vld [vmem:[%s4 + $0x8] sm:$0xff]
    %v314 = vld [vmem:[%s4 + $0x10] sm:$0xf]
    %v315 = vld [vmem:[#allocation8] sm:$0x1]
    %v316 = vpack.c.bf16 %v224, %v221
    %v317 = vpack.c.bf16 %v229, %v229
    %v318 = vlaneseq
    %v319 = vand.u32 %v318, 127
    %vm320 = vcmp.ge.s32.totalorder %v319, 0
    %vm321 = vcmp.ge.s32.totalorder %v319, 8
    %vm322 = vcmp.ge.s32.totalorder %v319, 16
    %vm323 = vcmp.ge.s32.totalorder %v319, 24
    %vm324 = vcmp.lt.s32.totalorder %v319, 8
    %vm325 = vcmp.lt.s32.totalorder %v319, 16
    %vm326 = vcmp.lt.s32.totalorder %v319, 24
    %vm327 = vcmp.lt.s32.totalorder %v319, 32
    %vm328 = vmand %vm320, %vm324
    %vm329 = vmand %vm321, %vm325
    %vm330 = vmand %vm322, %vm326
    %vm331 = vmand %vm323, %vm327
    %v332 = vsel %vm328, %v299, 0.0
    %v333 = vsel %vm328, %v302, 0.0
    %v334 = vsel %vm328, %v307, 0.0
    %v335 = vsel %vm329, %v299, 0.0
    %v336 = vsel %vm329, %v302, 0.0
    %v337 = vsel %vm329, %v307, 0.0
    %v338 = vsel %vm330, %v299, 0.0
    %v339 = vsel %vm330, %v302, 0.0
    %v340 = vsel %vm330, %v307, 0.0
    %v341 = vsel %vm331, %v299, 0.0
    %v342 = vsel %vm331, %v302, 0.0
    %v343 = vsel %vm331, %v307, 0.0
    %v344 = vpack.c.bf16 %v333, %v332
    %v345 = vpack.c.bf16 %v334, %v334
    %v346 = vpack.c.bf16 %v336, %v335
    %v347 = vpack.c.bf16 %v337, %v337
    %v348 = vpack.c.bf16 %v339, %v338
    %v349 = vpack.c.bf16 %v340, %v340
    %v350 = vpack.c.bf16 %v342, %v341
    %v351 = vpack.c.bf16 %v343, %v343
    %v353 = vsel %vm179, %v316, 0
    %v356 = vsel %vm179, %v317, 0
    %v359 = vsel %vm179, %v344, 0
    %v362 = vsel %vm179, %v345, 0
    %364 = vmatprep.subr.bf16.mxu0 0
    %365 = vmatpush1.bf16.xpose.msra.mxu0 %v359
    %366 = vmatprep.subr.bf16.mxu0 0
    %367 = vmatpush1.bf16.xpose.msra.mxu0 %v362
    %368 = vmatprep.subr.bf16.mxu0 0
    %369 = vmatpush1.bf16.xpose.msra.mxu0 0
    %370 = vmatprep.subr.bf16.mxu0 0
    %371 = vmatpush1.bf16.xpose.msra.mxu0 0
    %372 = vmatprep.subr.bf16.mxu0 0
    %373 = vmatpush1.bf16.xpose.msra.mxu0 0
    %374 = vmatprep.subr.bf16.mxu0 0
    %375 = vmatpush1.bf16.xpose.msra.mxu0 0
    %376 = vmatprep.subr.bf16.mxu0 0
    %377 = vmatpush1.bf16.xpose.msra.mxu0 0
    %378 = vmatprep.subr.bf16.mxu0 0
    %379 = vmatpush1.bf16.xpose.msra.mxu0 0
    %380 = vmatprep.subr.bf16.mxu0 0
    %381 = vmatpush1.bf16.xpose.msra.mxu0 0
    %382 = vmatprep.subr.bf16.mxu0 0
    %383 = vmatpush1.bf16.xpose.msra.mxu0 0
    %384 = vmatprep.subr.bf16.mxu0 0
    %385 = vmatpush1.bf16.xpose.msra.mxu0 0
    %386 = vmatprep.subr.bf16.mxu0 0
    %387 = vmatpush1.bf16.xpose.msra.mxu0 0
    %388 = vmatprep.subr.bf16.mxu0 0
    %389 = vmatpush1.bf16.xpose.msra.mxu0 0
    %390 = vmatprep.subr.bf16.mxu0 0
    %391 = vmatpush1.bf16.xpose.msra.mxu0 0
    %392 = vmatprep.subr.bf16.mxu0 0
    %393 = vmatpush1.bf16.xpose.msra.mxu0 0
    %394 = vmatprep.subr.bf16.mxu0 0
    %395 = vmatpush1.bf16.xpose.msra.mxu0 0
    %396 = vmatprep.mubr.bf16.mxu0 0
    %397 = vmatmul.mubr.bf16.gmra.mrb[0].mxu0 %v353
    %v398 = vpop.f32.mrb[0].mxu0
    %v399 = vadd.f32 0.0, %v398
    %v400 = vpop.f32.mrb[0].mxu0
    %v401 = vpop.f32.mrb[0].mxu0
    %v402 = vadd.f32 0.0, %v401
    %v403 = vpop.f32.mrb[0].mxu0
    %404 = vmatprep.mubr.bf16.mxu0 0
    %405 = vmatmul.mubr.bf16.gmra.mrb[0].mxu0 %v356
    %v406 = vpop.f32.mrb[0].mxu0
    %v407 = vadd.f32 0.0, %v406
    %v408 = vpop.f32.mrb[0].mxu0
    %v409 = vpop.f32.mrb[0].mxu0
    %v410 = vpop.f32.mrb[0].mxu0
    %411 = vdwg.mxu0
    %v413 = vsel %vm179, %v346, 0
    %v416 = vsel %vm179, %v347, 0
    %418 = vmatprep.subr.bf16.mxu0 0
    %419 = vmatpush1.bf16.xpose.msra.mxu0 %v413
    %420 = vmatprep.subr.bf16.mxu0 0
    %421 = vmatpush1.bf16.xpose.msra.mxu0 %v416
    %422 = vmatprep.subr.bf16.mxu0 0
    %423 = vmatpush1.bf16.xpose.msra.mxu0 0
    %424 = vmatprep.subr.bf16.mxu0 0
    %425 = vmatpush1.bf16.xpose.msra.mxu0 0
    %426 = vmatprep.subr.bf16.mxu0 0
    %427 = vmatpush1.bf16.xpose.msra.mxu0 0
    %428 = vmatprep.subr.bf16.mxu0 0
    %429 = vmatpush1.bf16.xpose.msra.mxu0 0
    %430 = vmatprep.subr.bf16.mxu0 0
    %431 = vmatpush1.bf16.xpose.msra.mxu0 0
    %432 = vmatprep.subr.bf16.mxu0 0
    %433 = vmatpush1.bf16.xpose.msra.mxu0 0
    %434 = vmatprep.subr.bf16.mxu0 0
    %435 = vmatpush1.bf16.xpose.msra.mxu0 0
    %436 = vmatprep.subr.bf16.mxu0 0
    %437 = vmatpush1.bf16.xpose.msra.mxu0 0
    %438 = vmatprep.subr.bf16.mxu0 0
    %439 = vmatpush1.bf16.xpose.msra.mxu0 0
    %440 = vmatprep.subr.bf16.mxu0 0
    %441 = vmatpush1.bf16.xpose.msra.mxu0 0
    %442 = vmatprep.subr.bf16.mxu0 0
    %443 = vmatpush1.bf16.xpose.msra.mxu0 0
    %444 = vmatprep.subr.bf16.mxu0 0
    %445 = vmatpush1.bf16.xpose.msra.mxu0 0
    %446 = vmatprep.subr.bf16.mxu0 0
    %447 = vmatpush1.bf16.xpose.msra.mxu0 0
    %448 = vmatprep.subr.bf16.mxu0 0
    %449 = vmatpush1.bf16.xpose.msra.mxu0 0
    %450 = vmatprep.mubr.bf16.mxu0 0
    %451 = vmatmul.mubr.bf16.gmra.mrb[0].mxu0 %v353
    %v452 = vpop.f32.mrb[0].mxu0
    %v453 = vadd.f32 0.0, %v452
    %v454 = vpop.f32.mrb[0].mxu0
    %v455 = vpop.f32.mrb[0].mxu0
    %v456 = vadd.f32 0.0, %v455
    %v457 = vpop.f32.mrb[0].mxu0
    %458 = vmatprep.mubr.bf16.mxu0 0
    %459 = vmatmul.mubr.bf16.gmra.mrb[0].mxu0 %v356
    %v460 = vpop.f32.mrb[0].mxu0
    %v461 = vadd.f32 0.0, %v460
    %v462 = vpop.f32.mrb[0].mxu0
    %v463 = vpop.f32.mrb[0].mxu0
    %v464 = vpop.f32.mrb[0].mxu0
    %465 = vdwg.mxu0
    %v467 = vsel %vm179, %v348, 0
    %v470 = vsel %vm179, %v349, 0
    %472 = vmatprep.subr.bf16.mxu0 0
    %473 = vmatpush1.bf16.xpose.msra.mxu0 %v467
    %474 = vmatprep.subr.bf16.mxu0 0
    %475 = vmatpush1.bf16.xpose.msra.mxu0 %v470
    %476 = vmatprep.subr.bf16.mxu0 0
    %477 = vmatpush1.bf16.xpose.msra.mxu0 0
    %478 = vmatprep.subr.bf16.mxu0 0
    %479 = vmatpush1.bf16.xpose.msra.mxu0 0
    %480 = vmatprep.subr.bf16.mxu0 0
    %481 = vmatpush1.bf16.xpose.msra.mxu0 0
    %482 = vmatprep.subr.bf16.mxu0 0
    %483 = vmatpush1.bf16.xpose.msra.mxu0 0
    %484 = vmatprep.subr.bf16.mxu0 0
    %485 = vmatpush1.bf16.xpose.msra.mxu0 0
    %486 = vmatprep.subr.bf16.mxu0 0
    %487 = vmatpush1.bf16.xpose.msra.mxu0 0
    %488 = vmatprep.subr.bf16.mxu0 0
    %489 = vmatpush1.bf16.xpose.msra.mxu0 0
    %490 = vmatprep.subr.bf16.mxu0 0
    %491 = vmatpush1.bf16.xpose.msra.mxu0 0
    %492 = vmatprep.subr.bf16.mxu0 0
    %493 = vmatpush1.bf16.xpose.msra.mxu0 0
    %494 = vmatprep.subr.bf16.mxu0 0
    %495 = vmatpush1.bf16.xpose.msra.mxu0 0
    %496 = vmatprep.subr.bf16.mxu0 0
    %497 = vmatpush1.bf16.xpose.msra.mxu0 0
    %498 = vmatprep.subr.bf16.mxu0 0
    %499 = vmatpush1.bf16.xpose.msra.mxu0 0
    %500 = vmatprep.subr.bf16.mxu0 0
    %501 = vmatpush1.bf16.xpose.msra.mxu0 0
    %502 = vmatprep.subr.bf16.mxu0 0
    %503 = vmatpush1.bf16.xpose.msra.mxu0 0
    %504 = vmatprep.mubr.bf16.mxu0 0
    %505 = vmatmul.mubr.bf16.gmra.mrb[0].mxu0 %v353
    %v506 = vpop.f32.mrb[0].mxu0
    %v507 = vadd.f32 0.0, %v506
    %v508 = vpop.f32.mrb[0].mxu0
    %v509 = vpop.f32.mrb[0].mxu0
    %v510 = vadd.f32 0.0, %v509
    %v511 = vpop.f32.mrb[0].mxu0
    %512 = vmatprep.mubr.bf16.mxu0 0
    %513 = vmatmul.mubr.bf16.gmra.mrb[0].mxu0 %v356
    %v514 = vpop.f32.mrb[0].mxu0
    %v515 = vadd.f32 0.0, %v514
    %v516 = vpop.f32.mrb[0].mxu0
    %v517 = vpop.f32.mrb[0].mxu0
    %v518 = vpop.f32.mrb[0].mxu0
    %519 = vdwg.mxu0
    %v521 = vsel %vm179, %v350, 0
    %v524 = vsel %vm179, %v351, 0
    %526 = vmatprep.subr.bf16.mxu0 0
    %527 = vmatpush1.bf16.xpose.msra.mxu0 %v521
    %528 = vmatprep.subr.bf16.mxu0 0
    %529 = vmatpush1.bf16.xpose.msra.mxu0 %v524
    %530 = vmatprep.subr.bf16.mxu0 0
    %531 = vmatpush1.bf16.xpose.msra.mxu0 0
    %532 = vmatprep.subr.bf16.mxu0 0
    %533 = vmatpush1.bf16.xpose.msra.mxu0 0
    %534 = vmatprep.subr.bf16.mxu0 0
    %535 = vmatpush1.bf16.xpose.msra.mxu0 0
    %536 = vmatprep.subr.bf16.mxu0 0
    %537 = vmatpush1.bf16.xpose.msra.mxu0 0
    %538 = vmatprep.subr.bf16.mxu0 0
    %539 = vmatpush1.bf16.xpose.msra.mxu0 0
    %540 = vmatprep.subr.bf16.mxu0 0
    %541 = vmatpush1.bf16.xpose.msra.mxu0 0
    %542 = vmatprep.subr.bf16.mxu0 0
    %543 = vmatpush1.bf16.xpose.msra.mxu0 0
    %544 = vmatprep.subr.bf16.mxu0 0
    %545 = vmatpush1.bf16.xpose.msra.mxu0 0
    %546 = vmatprep.subr.bf16.mxu0 0
    %547 = vmatpush1.bf16.xpose.msra.mxu0 0
    %548 = vmatprep.subr.bf16.mxu0 0
    %549 = vmatpush1.bf16.xpose.msra.mxu0 0
    %550 = vmatprep.subr.bf16.mxu0 0
    %551 = vmatpush1.bf16.xpose.msra.mxu0 0
    %552 = vmatprep.subr.bf16.mxu0 0
    %553 = vmatpush1.bf16.xpose.msra.mxu0 0
    %554 = vmatprep.subr.bf16.mxu0 0
    %555 = vmatpush1.bf16.xpose.msra.mxu0 0
    %556 = vmatprep.subr.bf16.mxu0 0
    %557 = vmatpush1.bf16.xpose.msra.mxu0 0
    %558 = vmatprep.mubr.bf16.mxu0 0
    %559 = vmatmul.mubr.bf16.gmra.mrb[0].mxu0 %v353
    %v560 = vpop.f32.mrb[0].mxu0
    %v561 = vadd.f32 0.0, %v560
    %v562 = vpop.f32.mrb[0].mxu0
    %v563 = vpop.f32.mrb[0].mxu0
    %v564 = vadd.f32 0.0, %v563
    %v565 = vpop.f32.mrb[0].mxu0
    %566 = vmatprep.mubr.bf16.mxu0 0
    %567 = vmatmul.mubr.bf16.gmra.mrb[0].mxu0 %v356
    %v568 = vpop.f32.mrb[0].mxu0
    %v569 = vadd.f32 0.0, %v568
    %v570 = vpop.f32.mrb[0].mxu0
    %v571 = vpop.f32.mrb[0].mxu0
    %v572 = vpop.f32.mrb[0].mxu0
    %573 = vdwg.mxu0
    %v575 = vlaneseq
    %v576 = vshrl.u32 %v575, 7
    %v577 = vsub.s32 0, %v576
    %v578 = vrot.slane %v315, %v577
    %581 = vset.pattern.permute.xlu0 0
    %582 = vperm.xlu0 %581, %v312
    %v583 = vpop.permute.xlu0 %582
    %586 = vset.pattern.permute.xlu0 0
    %587 = vperm.xlu0 %586, %v313
    %v588 = vpop.permute.xlu0 %587
    %591 = vset.pattern.permute.xlu0 0
    %592 = vperm.xlu0 %591, %v314
    %v593 = vpop.permute.xlu0 %592
    %vm595 = vcmp.eq.f32.partialorder %v578, %v583
    %vm596 = vcmp.eq.f32.partialorder %v578, %v588
    %vm597 = vcmp.eq.f32.partialorder %v578, %v593
    %vm598 = vcmp.eq.f32.partialorder %v315, -2.0
    %v599 = vsel %vm598, 1, 0
    %v600 = vlaneseq
    %v601 = vshrl.u32 %v600, 7
    %v602 = vsub.s32 0, %v601
    %v603 = vrot.slane %v599, %v602
    %vm604 = vcmp.eq.s32.totalorder %v603, 1
    %vm605 = vmor %vm595, %vm604
    %vm606 = vmor %vm596, %vm604
    %vm607 = vmor %vm597, %vm604
    %v608 = vsel %vm605, 1, 0
    %v609 = vsel %vm606, 1, 0
    %v610 = vsel %vm607, 1, 0
    %vm611 = vcmp.eq.s32.totalorder %v608, 1
    %vm612 = vcmp.eq.s32.totalorder %v609, 1
    %vm613 = vcmp.eq.s32.totalorder %v610, 1
    %v614 = vsel %vm611, %v399, -1e+09
    %v615 = vsel %vm612, %v402, -1e+09
    %v616 = vsel %vm613, %v407, -1e+09
    %v617 = vsel %vm611, %v453, -1e+09
    %v618 = vsel %vm612, %v456, -1e+09
    %v619 = vsel %vm613, %v461, -1e+09
    %v620 = vsel %vm611, %v507, -1e+09
    %v621 = vsel %vm612, %v510, -1e+09
    %v622 = vsel %vm613, %v515, -1e+09
    %v623 = vsel %vm611, %v561, -1e+09
    %v624 = vsel %vm612, %v564, -1e+09
    %v625 = vsel %vm613, %v569, -1e+09
    %vm626 = vcmask 138240
    %v627 = vsel %vm626, %v614, -inf
    %628 = vmax.xlane.f32.xlu0 %v627
    %v629 = vpop.xlane.xlu0 %628
    %v630 = vsel %vm626, %v615, -inf
    %631 = vmax.xlane.f32.xlu0 %v630
    %v632 = vpop.xlane.xlu0 %631
    %vm633 = vcmask 134144
    %v634 = vsel %vm633, %v616, -inf
    %635 = vmax.xlane.f32.xlu0 %v634
    %v636 = vpop.xlane.xlu0 %635
    %v637 = vsel %vm626, %v617, -inf
    %638 = vmax.xlane.f32.xlu0 %v637
    %v639 = vpop.xlane.xlu0 %638
    %v640 = vsel %vm626, %v618, -inf
    %641 = vmax.xlane.f32.xlu0 %v640
    %v642 = vpop.xlane.xlu0 %641
    %v643 = vsel %vm633, %v619, -inf
    %644 = vmax.xlane.f32.xlu0 %v643
    %v645 = vpop.xlane.xlu0 %644
    %v646 = vsel %vm626, %v620, -inf
    %647 = vmax.xlane.f32.xlu0 %v646
    %v648 = vpop.xlane.xlu0 %647
    %v649 = vsel %vm626, %v621, -inf
    %650 = vmax.xlane.f32.xlu0 %v649
    %v651 = vpop.xlane.xlu0 %650
    %v652 = vsel %vm633, %v622, -inf
    %653 = vmax.xlane.f32.xlu0 %v652
    %v654 = vpop.xlane.xlu0 %653
    %v655 = vsel %vm626, %v623, -inf
    %656 = vmax.xlane.f32.xlu0 %v655
    %v657 = vpop.xlane.xlu0 %656
    %v658 = vsel %vm626, %v624, -inf
    %659 = vmax.xlane.f32.xlu0 %v658
    %v660 = vpop.xlane.xlu0 %659
    %v661 = vsel %vm633, %v625, -inf
    %662 = vmax.xlane.f32.xlu0 %v661
    %v663 = vpop.xlane.xlu0 %662
    %v664 = vsub.f32 %v614, %v629
    %v665 = vsub.f32 %v615, %v632
    %v666 = vsub.f32 %v616, %v636
    %v667 = vsub.f32 %v617, %v639
    %v668 = vsub.f32 %v618, %v642
    %v669 = vsub.f32 %v619, %v645
    %v670 = vsub.f32 %v620, %v648
    %v671 = vsub.f32 %v621, %v651
    %v672 = vsub.f32 %v622, %v654
    %v673 = vsub.f32 %v623, %v657
    %v674 = vsub.f32 %v624, %v660
    %v675 = vsub.f32 %v625, %v663
    %v676 = vmul.f32 %v664, 1.442695
    %v677 = vpow.pop %v676
    %v678 = vmul.f32 %v665, 1.442695
    %v679 = vpow.pop %v678
    %v680 = vmul.f32 %v666, 1.442695
    %v681 = vpow.pop %v680
    %v682 = vmul.f32 %v667, 1.442695
    %v683 = vpow.pop %v682
    %v684 = vmul.f32 %v668, 1.442695
    %v685 = vpow.pop %v684
    %v686 = vmul.f32 %v669, 1.442695
    %v687 = vpow.pop %v686
    %v688 = vmul.f32 %v670, 1.442695
    %v689 = vpow.pop %v688
    %v690 = vmul.f32 %v671, 1.442695
    %v691 = vpow.pop %v690
    %v692 = vmul.f32 %v672, 1.442695
    %v693 = vpow.pop %v692
    %v694 = vmul.f32 %v673, 1.442695
    %v695 = vpow.pop %v694
    %v696 = vmul.f32 %v674, 1.442695
    %v697 = vpow.pop %v696
    %v698 = vmul.f32 %v675, 1.442695
    %v699 = vpow.pop %v698
    %v700 = vsel %vm626, %v677, 0.0
    %701 = vadd.xlane.f32.xlu0 %v700
    %v702 = vpop.xlane.xlu0 %701
    %v703 = vsel %vm626, %v679, 0.0
    %704 = vadd.xlane.f32.xlu0 %v703
    %v705 = vpop.xlane.xlu0 %704
    %v706 = vsel %vm633, %v681, 0.0
    %707 = vadd.xlane.f32.xlu0 %v706
    %v708 = vpop.xlane.xlu0 %707
    %v709 = vsel %vm626, %v683, 0.0
    %710 = vadd.xlane.f32.xlu0 %v709
    %v711 = vpop.xlane.xlu0 %710
    %v712 = vsel %vm626, %v685, 0.0
    %713 = vadd.xlane.f32.xlu0 %v712
    %v714 = vpop.xlane.xlu0 %713
    %v715 = vsel %vm633, %v687, 0.0
    %716 = vadd.xlane.f32.xlu0 %v715
    %v717 = vpop.xlane.xlu0 %716
    %v718 = vsel %vm626, %v689, 0.0
    %719 = vadd.xlane.f32.xlu0 %v718
    %v720 = vpop.xlane.xlu0 %719
    %v721 = vsel %vm626, %v691, 0.0
    %722 = vadd.xlane.f32.xlu0 %v721
    %v723 = vpop.xlane.xlu0 %722
    %v724 = vsel %vm633, %v693, 0.0
    %725 = vadd.xlane.f32.xlu0 %v724
    %v726 = vpop.xlane.xlu0 %725
    %v727 = vsel %vm626, %v695, 0.0
    %728 = vadd.xlane.f32.xlu0 %v727
    %v729 = vpop.xlane.xlu0 %728
    %v730 = vsel %vm626, %v697, 0.0
    %731 = vadd.xlane.f32.xlu0 %v730
    %v732 = vpop.xlane.xlu0 %731
    %v733 = vsel %vm633, %v699, 0.0
    %734 = vadd.xlane.f32.xlu0 %v733
    %v735 = vpop.xlane.xlu0 %734
    %v736 = vrcp.pop %v702
    %v737 = vrcp.pop %v705
    %v738 = vrcp.pop %v708
    %v739 = vrcp.pop %v711
    %v740 = vrcp.pop %v714
    %v741 = vrcp.pop %v717
    %v742 = vrcp.pop %v720
    %v743 = vrcp.pop %v723
    %v744 = vrcp.pop %v726
    %v745 = vrcp.pop %v729
    %v746 = vrcp.pop %v732
    %v747 = vrcp.pop %v735
    %v748 = vmul.f32 %v736, 0.25
    %v749 = vmul.f32 %v737, 0.25
    %v750 = vmul.f32 %v738, 0.25
    %v751 = vmul.f32 %v739, 0.25
    %v752 = vmul.f32 %v740, 0.25
    %v753 = vmul.f32 %v741, 0.25
    %v754 = vmul.f32 %v742, 0.25
    %v755 = vmul.f32 %v743, 0.25
    %v756 = vmul.f32 %v744, 0.25
    %v757 = vmul.f32 %v745, 0.25
    %v758 = vmul.f32 %v746, 0.25
    %v759 = vmul.f32 %v747, 0.25
    %v760 = vmul.f32 %v677, %v748
    %v761 = vmul.f32 %v679, %v749
    %v762 = vmul.f32 %v681, %v750
    %v763 = vmul.f32 %v683, %v751
    %v764 = vmul.f32 %v685, %v752
    %v765 = vmul.f32 %v687, %v753
    %v766 = vmul.f32 %v689, %v754
    %v767 = vmul.f32 %v691, %v755
    %v768 = vmul.f32 %v693, %v756
    %v769 = vmul.f32 %v695, %v757
    %v770 = vmul.f32 %v697, %v758
    %v771 = vmul.f32 %v699, %v759
    %v772 = vsel %vm626, %v760, 0.0
    %v773 = vsel %vm626, %v763, 0.0
    %v774 = vadd.f32 %v772, %v773
    %v775 = vsel %vm626, %v766, 0.0
    %v776 = vadd.f32 %v774, %v775
    %v777 = vsel %vm626, %v769, 0.0
    %v778 = vadd.f32 %v776, %v777
    %v779 = vsel %vm626, %v761, 0.0
    %v780 = vsel %vm626, %v764, 0.0
    %v781 = vadd.f32 %v779, %v780
    %v782 = vsel %vm626, %v767, 0.0
    %v783 = vadd.f32 %v781, %v782
    %v784 = vsel %vm626, %v770, 0.0
    %v785 = vadd.f32 %v783, %v784
    %v786 = vsel %vm633, %v762, 0.0
    %v787 = vsel %vm633, %v765, 0.0
    %v788 = vadd.f32 %v786, %v787
    %v789 = vsel %vm633, %v768, 0.0
    %v790 = vadd.f32 %v788, %v789
    %v791 = vsel %vm633, %v771, 0.0
    %v792 = vadd.f32 %v790, %v791
    %v793 = vpack.c.bf16 %v785, %v778
    %v794 = vpack.c.bf16 %v792, %v792
    %v797 = vsel %vm626, %v793, 0
    %v800 = vsel %vm626, %v794, 0
    %vm802 = vcmask 1040384
    %v803 = vsel 0, 4294967295, 65535
    %v804 = vsel %vm802, %v803, 0
    %v805 = vand.u32 %v245, %v804
    %807 = vmatprep.subr.bf16.mxu0 0
    %808 = vmatpush1.bf16.msra.mxu0 %v244
    %809 = vmatprep.subr.bf16.mxu0 0
    %810 = vmatpush1.bf16.msra.mxu0 %v805
    %811 = vmatprep.subr.bf16.mxu0 0
    %812 = vmatpush1.bf16.msra.mxu0 0
    %813 = vmatprep.subr.bf16.mxu0 0
    %814 = vmatpush1.bf16.msra.mxu0 0
    %815 = vmatprep.subr.bf16.mxu0 0
    %816 = vmatpush1.bf16.msra.mxu0 0
    %817 = vmatprep.subr.bf16.mxu0 0
    %818 = vmatpush1.bf16.msra.mxu0 0
    %819 = vmatprep.subr.bf16.mxu0 0
    %820 = vmatpush1.bf16.msra.mxu0 0
    %821 = vmatprep.subr.bf16.mxu0 0
    %822 = vmatpush1.bf16.msra.mxu0 0
    %823 = vmatprep.subr.bf16.mxu0 0
    %824 = vmatpush1.bf16.msra.mxu0 0
    %825 = vmatprep.subr.bf16.mxu0 0
    %826 = vmatpush1.bf16.msra.mxu0 0
    %827 = vmatprep.subr.bf16.mxu0 0
    %828 = vmatpush1.bf16.msra.mxu0 0
    %829 = vmatprep.subr.bf16.mxu0 0
    %830 = vmatpush1.bf16.msra.mxu0 0
    %831 = vmatprep.subr.bf16.mxu0 0
    %832 = vmatpush1.bf16.msra.mxu0 0
    %833 = vmatprep.subr.bf16.mxu0 0
    %834 = vmatpush1.bf16.msra.mxu0 0
    %835 = vmatprep.subr.bf16.mxu0 0
    %836 = vmatpush1.bf16.msra.mxu0 0
    %837 = vmatprep.subr.bf16.mxu0 0
    %838 = vmatpush1.bf16.msra.mxu0 0
    %839 = vmatprep.mubr.bf16.mxu0 0
    %840 = vmatmul.mubr.bf16.gmra.mrb[0].mxu0 %v797
    %v841 = vpop.f32.mrb[0].mxu0
    %v842 = vadd.f32 0.0, %v841
    %v843 = vpop.f32.mrb[0].mxu0
    %v844 = vpop.f32.mrb[0].mxu0
    %v845 = vadd.f32 0.0, %v844
    %v846 = vpop.f32.mrb[0].mxu0
    %847 = vmatprep.mubr.bf16.mxu0 0
    %848 = vmatmul.mubr.bf16.gmra.mrb[0].mxu0 %v800
    %v849 = vpop.f32.mrb[0].mxu0
    %v850 = vadd.f32 0.0, %v849
    %v851 = vpop.f32.mrb[0].mxu0
    %v852 = vpop.f32.mrb[0].mxu0
    %v853 = vpop.f32.mrb[0].mxu0
    %854 = vdwg.mxu0
    %v855 = vld [vmem:[%s5] sm:$0xff]
    %v856 = vld [vmem:[%s5 + $0x8] sm:$0x3f]
    %v857 = vld [vmem:[#allocation7] sm:$0x1]
    %v858 = vpack.c.bf16 %v302, %v299
    %v859 = vsel %vm328, %v221, 0.0
    %v860 = vsel %vm328, %v224, 0.0
    %v861 = vsel %vm328, %v229, 0.0
    %v862 = vsel %vm329, %v221, 0.0
    %v863 = vsel %vm329, %v224, 0.0
    %v864 = vsel %vm329, %v229, 0.0
    %v865 = vsel %vm330, %v221, 0.0
    %v866 = vsel %vm330, %v224, 0.0
    %v867 = vsel %vm330, %v229, 0.0
    %v868 = vsel %vm331, %v221, 0.0
    %v869 = vsel %vm331, %v224, 0.0
    %v870 = vsel %vm331, %v229, 0.0
    %v871 = vpack.c.bf16 %v860, %v859
    %v872 = vpack.c.bf16 %v861, %v861
    %v873 = vpack.c.bf16 %v863, %v862
    %v874 = vpack.c.bf16 %v864, %v864
    %v875 = vpack.c.bf16 %v866, %v865
    %v876 = vpack.c.bf16 %v867, %v867
    %v877 = vpack.c.bf16 %v869, %v868
    %v878 = vpack.c.bf16 %v870, %v870
    %v880 = vsel %vm179, %v858, 0
    %v883 = vsel %vm179, %v871, 0
    %v886 = vsel %vm179, %v872, 0
    %888 = vmatprep.subr.bf16.mxu0 0
    %889 = vmatpush1.bf16.xpose.msra.mxu0 %v883
    %890 = vmatprep.subr.bf16.mxu0 0
    %891 = vmatpush1.bf16.xpose.msra.mxu0 %v886
    %892 = vmatprep.subr.bf16.mxu0 0
    %893 = vmatpush1.bf16.xpose.msra.mxu0 0
    %894 = vmatprep.subr.bf16.mxu0 0
    %895 = vmatpush1.bf16.xpose.msra.mxu0 0
    %896 = vmatprep.subr.bf16.mxu0 0
    %897 = vmatpush1.bf16.xpose.msra.mxu0 0
    %898 = vmatprep.subr.bf16.mxu0 0
    %899 = vmatpush1.bf16.xpose.msra.mxu0 0
    %900 = vmatprep.subr.bf16.mxu0 0
    %901 = vmatpush1.bf16.xpose.msra.mxu0 0
    %902 = vmatprep.subr.bf16.mxu0 0
    %903 = vmatpush1.bf16.xpose.msra.mxu0 0
    %904 = vmatprep.subr.bf16.mxu0 0
    %905 = vmatpush1.bf16.xpose.msra.mxu0 0
    %906 = vmatprep.subr.bf16.mxu0 0
    %907 = vmatpush1.bf16.xpose.msra.mxu0 0
    %908 = vmatprep.subr.bf16.mxu0 0
    %909 = vmatpush1.bf16.xpose.msra.mxu0 0
    %910 = vmatprep.subr.bf16.mxu0 0
    %911 = vmatpush1.bf16.xpose.msra.mxu0 0
    %912 = vmatprep.subr.bf16.mxu0 0
    %913 = vmatpush1.bf16.xpose.msra.mxu0 0
    %914 = vmatprep.subr.bf16.mxu0 0
    %915 = vmatpush1.bf16.xpose.msra.mxu0 0
    %916 = vmatprep.subr.bf16.mxu0 0
    %917 = vmatpush1.bf16.xpose.msra.mxu0 0
    %918 = vmatprep.subr.bf16.mxu0 0
    %919 = vmatpush1.bf16.xpose.msra.mxu0 0
    %920 = vmatprep.mubr.bf16.mxu0 0
    %921 = vmatmul.mubr.bf16.gmra.mrb[0].mxu0 %v880
    %v922 = vpop.f32.mrb[0].mxu0
    %v923 = vadd.f32 0.0, %v922
    %v924 = vpop.f32.mrb[0].mxu0
    %v925 = vpop.f32.mrb[0].mxu0
    %v926 = vadd.f32 0.0, %v925
    %v927 = vpop.f32.mrb[0].mxu0
    %928 = vdwg.mxu0
    %v930 = vsel %vm179, %v873, 0
    %v933 = vsel %vm179, %v874, 0
    %935 = vmatprep.subr.bf16.mxu0 0
    %936 = vmatpush1.bf16.xpose.msra.mxu0 %v930
    %937 = vmatprep.subr.bf16.mxu0 0
    %938 = vmatpush1.bf16.xpose.msra.mxu0 %v933
    %939 = vmatprep.subr.bf16.mxu0 0
    %940 = vmatpush1.bf16.xpose.msra.mxu0 0
    %941 = vmatprep.subr.bf16.mxu0 0
    %942 = vmatpush1.bf16.xpose.msra.mxu0 0
    %943 = vmatprep.subr.bf16.mxu0 0
    %944 = vmatpush1.bf16.xpose.msra.mxu0 0
    %945 = vmatprep.subr.bf16.mxu0 0
    %946 = vmatpush1.bf16.xpose.msra.mxu0 0
    %947 = vmatprep.subr.bf16.mxu0 0
    %948 = vmatpush1.bf16.xpose.msra.mxu0 0
    %949 = vmatprep.subr.bf16.mxu0 0
    %950 = vmatpush1.bf16.xpose.msra.mxu0 0
    %951 = vmatprep.subr.bf16.mxu0 0
    %952 = vmatpush1.bf16.xpose.msra.mxu0 0
    %953 = vmatprep.subr.bf16.mxu0 0
    %954 = vmatpush1.bf16.xpose.msra.mxu0 0
    %955 = vmatprep.subr.bf16.mxu0 0
    %956 = vmatpush1.bf16.xpose.msra.mxu0 0
    %957 = vmatprep.subr.bf16.mxu0 0
    %958 = vmatpush1.bf16.xpose.msra.mxu0 0
    %959 = vmatprep.subr.bf16.mxu0 0
    %960 = vmatpush1.bf16.xpose.msra.mxu0 0
    %961 = vmatprep.subr.bf16.mxu0 0
    %962 = vmatpush1.bf16.xpose.msra.mxu0 0
    %963 = vmatprep.subr.bf16.mxu0 0
    %964 = vmatpush1.bf16.xpose.msra.mxu0 0
    %965 = vmatprep.subr.bf16.mxu0 0
    %966 = vmatpush1.bf16.xpose.msra.mxu0 0
    %967 = vmatprep.mubr.bf16.mxu0 0
    %968 = vmatmul.mubr.bf16.gmra.mrb[0].mxu0 %v880
    %v969 = vpop.f32.mrb[0].mxu0
    %v970 = vadd.f32 0.0, %v969
    %v971 = vpop.f32.mrb[0].mxu0
    %v972 = vpop.f32.mrb[0].mxu0
    %v973 = vadd.f32 0.0, %v972
    %v974 = vpop.f32.mrb[0].mxu0
    %975 = vdwg.mxu0
    %v977 = vsel %vm179, %v875, 0
    %v980 = vsel %vm179, %v876, 0
    %982 = vmatprep.subr.bf16.mxu0 0
    %983 = vmatpush1.bf16.xpose.msra.mxu0 %v977
    %984 = vmatprep.subr.bf16.mxu0 0
    %985 = vmatpush1.bf16.xpose.msra.mxu0 %v980
    %986 = vmatprep.subr.bf16.mxu0 0
    %987 = vmatpush1.bf16.xpose.msra.mxu0 0
    %988 = vmatprep.subr.bf16.mxu0 0
    %989 = vmatpush1.bf16.xpose.msra.mxu0 0
    %990 = vmatprep.subr.bf16.mxu0 0
    %991 = vmatpush1.bf16.xpose.msra.mxu0 0
    %992 = vmatprep.subr.bf16.mxu0 0
    %993 = vmatpush1.bf16.xpose.msra.mxu0 0
    %994 = vmatprep.subr.bf16.mxu0 0
    %995 = vmatpush1.bf16.xpose.msra.mxu0 0
    %996 = vmatprep.subr.bf16.mxu0 0
    %997 = vmatpush1.bf16.xpose.msra.mxu0 0
    %998 = vmatprep.subr.bf16.mxu0 0
    %999 = vmatpush1.bf16.xpose.msra.mxu0 0
    %1000 = vmatprep.subr.bf16.mxu0 0
    %1001 = vmatpush1.bf16.xpose.msra.mxu0 0
    %1002 = vmatprep.subr.bf16.mxu0 0
    %1003 = vmatpush1.bf16.xpose.msra.mxu0 0
    %1004 = vmatprep.subr.bf16.mxu0 0
    %1005 = vmatpush1.bf16.xpose.msra.mxu0 0
    %1006 = vmatprep.subr.bf16.mxu0 0
    %1007 = vmatpush1.bf16.xpose.msra.mxu0 0
    %1008 = vmatprep.subr.bf16.mxu0 0
    %1009 = vmatpush1.bf16.xpose.msra.mxu0 0
    %1010 = vmatprep.subr.bf16.mxu0 0
    %1011 = vmatpush1.bf16.xpose.msra.mxu0 0
    %1012 = vmatprep.subr.bf16.mxu0 0
    %1013 = vmatpush1.bf16.xpose.msra.mxu0 0
    %1014 = vmatprep.mubr.bf16.mxu0 0
    %1015 = vmatmul.mubr.bf16.gmra.mrb[0].mxu0 %v880
    %v1016 = vpop.f32.mrb[0].mxu0
    %v1017 = vadd.f32 0.0, %v1016
    %v1018 = vpop.f32.mrb[0].mxu0
    %v1019 = vpop.f32.mrb[0].mxu0
    %v1020 = vadd.f32 0.0, %v1019
    %v1021 = vpop.f32.mrb[0].mxu0
    %1022 = vdwg.mxu0
    %v1024 = vsel %vm179, %v877, 0
    %v1027 = vsel %vm179, %v878, 0
    %1029 = vmatprep.subr.bf16.mxu0 0
    %1030 = vmatpush1.bf16.xpose.msra.mxu0 %v1024
    %1031 = vmatprep.subr.bf16.mxu0 0
    %1032 = vmatpush1.bf16.xpose.msra.mxu0 %v1027
    %1033 = vmatprep.subr.bf16.mxu0 0
    %1034 = vmatpush1.bf16.xpose.msra.mxu0 0
    %1035 = vmatprep.subr.bf16.mxu0 0
    %1036 = vmatpush1.bf16.xpose.msra.mxu0 0
    %1037 = vmatprep.subr.bf16.mxu0 0
    %1038 = vmatpush1.bf16.xpose.msra.mxu0 0
    %1039 = vmatprep.subr.bf16.mxu0 0
    %1040 = vmatpush1.bf16.xpose.msra.mxu0 0
    %1041 = vmatprep.subr.bf16.mxu0 0
    %1042 = vmatpush1.bf16.xpose.msra.mxu0 0
    %1043 = vmatprep.subr.bf16.mxu0 0
    %1044 = vmatpush1.bf16.xpose.msra.mxu0 0
    %1045 = vmatprep.subr.bf16.mxu0 0
    %1046 = vmatpush1.bf16.xpose.msra.mxu0 0
    %1047 = vmatprep.subr.bf16.mxu0 0
    %1048 = vmatpush1.bf16.xpose.msra.mxu0 0
    %1049 = vmatprep.subr.bf16.mxu0 0
    %1050 = vmatpush1.bf16.xpose.msra.mxu0 0
    %1051 = vmatprep.subr.bf16.mxu0 0
    %1052 = vmatpush1.bf16.xpose.msra.mxu0 0
    %1053 = vmatprep.subr.bf16.mxu0 0
    %1054 = vmatpush1.bf16.xpose.msra.mxu0 0
    %1055 = vmatprep.subr.bf16.mxu0 0
    %1056 = vmatpush1.bf16.xpose.msra.mxu0 0
    %1057 = vmatprep.subr.bf16.mxu0 0
    %1058 = vmatpush1.bf16.xpose.msra.mxu0 0
    %1059 = vmatprep.subr.bf16.mxu0 0
    %1060 = vmatpush1.bf16.xpose.msra.mxu0 0
    %1061 = vmatprep.mubr.bf16.mxu0 0
    %1062 = vmatmul.mubr.bf16.gmra.mrb[0].mxu0 %v880
    %v1063 = vpop.f32.mrb[0].mxu0
    %v1064 = vadd.f32 0.0, %v1063
    %v1065 = vpop.f32.mrb[0].mxu0
    %v1066 = vpop.f32.mrb[0].mxu0
    %v1067 = vadd.f32 0.0, %v1066
    %v1068 = vpop.f32.mrb[0].mxu0
    %1069 = vdwg.mxu0
    %v1071 = vlaneseq
    %v1072 = vshrl.u32 %v1071, 7
    %v1073 = vsub.s32 0, %v1072
    %v1074 = vrot.slane %v857, %v1073
    %1077 = vset.pattern.permute.xlu0 0
    %1078 = vperm.xlu0 %1077, %v855
    %v1079 = vpop.permute.xlu0 %1078
    %1082 = vset.pattern.permute.xlu0 0
    %1083 = vperm.xlu0 %1082, %v856
    %v1084 = vpop.permute.xlu0 %1083
    %vm1086 = vcmp.eq.f32.partialorder %v1074, %v1079
    %vm1087 = vcmp.eq.f32.partialorder %v1074, %v1084
    %vm1088 = vcmp.eq.f32.partialorder %v857, -2.0
    %v1089 = vsel %vm1088, 1, 0
    %v1090 = vlaneseq
    %v1091 = vshrl.u32 %v1090, 7
    %v1092 = vsub.s32 0, %v1091
    %v1093 = vrot.slane %v1089, %v1092
    %vm1094 = vcmp.eq.s32.totalorder %v1093, 1
    %vm1095 = vmor %vm1086, %vm1094
    %vm1096 = vmor %vm1087, %vm1094
    %v1097 = vsel %vm1095, 1, 0
    %v1098 = vsel %vm1096, 1, 0
    %vm1099 = vcmp.eq.s32.totalorder %v1097, 1
    %vm1100 = vcmp.eq.s32.totalorder %v1098, 1
    %v1101 = vsel %vm1099, %v923, -1e+09
    %v1102 = vsel %vm1100, %v926, -1e+09
    %v1103 = vsel %vm1099, %v970, -1e+09
    %v1104 = vsel %vm1100, %v973, -1e+09
    %v1105 = vsel %vm1099, %v1017, -1e+09
    %v1106 = vsel %vm1100, %v1020, -1e+09
    %v1107 = vsel %vm1099, %v1064, -1e+09
    %v1108 = vsel %vm1100, %v1067, -1e+09
    %vm1109 = vcmask 187392
    %v1110 = vsel %vm1109, %v1101, -inf
    %1111 = vmax.xlane.f32.xlu0 %v1110
    %v1112 = vpop.xlane.xlu0 %1111
    %vm1113 = vcmask 185344
    %v1114 = vsel %vm1113, %v1102, -inf
    %1115 = vmax.xlane.f32.xlu0 %v1114
    %v1116 = vpop.xlane.xlu0 %1115
    %v1117 = vsel %vm1109, %v1103, -inf
    %1118 = vmax.xlane.f32.xlu0 %v1117
    %v1119 = vpop.xlane.xlu0 %1118
    %v1120 = vsel %vm1113, %v1104, -inf
    %1121 = vmax.xlane.f32.xlu0 %v1120
    %v1122 = vpop.xlane.xlu0 %1121
    %v1123 = vsel %vm1109, %v1105, -inf
    %1124 = vmax.xlane.f32.xlu0 %v1123
    %v1125 = vpop.xlane.xlu0 %1124
    %v1126 = vsel %vm1113, %v1106, -inf
    %1127 = vmax.xlane.f32.xlu0 %v1126
    %v1128 = vpop.xlane.xlu0 %1127
    %v1129 = vsel %vm1109, %v1107, -inf
    %1130 = vmax.xlane.f32.xlu0 %v1129
    %v1131 = vpop.xlane.xlu0 %1130
    %v1132 = vsel %vm1113, %v1108, -inf
    %1133 = vmax.xlane.f32.xlu0 %v1132
    %v1134 = vpop.xlane.xlu0 %1133
    %v1135 = vsub.f32 %v1101, %v1112
    %v1136 = vsub.f32 %v1102, %v1116
    %v1137 = vsub.f32 %v1103, %v1119
    %v1138 = vsub.f32 %v1104, %v1122
    %v1139 = vsub.f32 %v1105, %v1125
    %v1140 = vsub.f32 %v1106, %v1128
    %v1141 = vsub.f32 %v1107, %v1131
    %v1142 = vsub.f32 %v1108, %v1134
    %v1143 = vmul.f32 %v1135, 1.442695
    %v1144 = vpow.pop %v1143
    %v1145 = vmul.f32 %v1136, 1.442695
    %v1146 = vpow.pop %v1145
    %v1147 = vmul.f32 %v1137, 1.442695
    %v1148 = vpow.pop %v1147
    %v1149 = vmul.f32 %v1138, 1.442695
    %v1150 = vpow.pop %v1149
    %v1151 = vmul.f32 %v1139, 1.442695
    %v1152 = vpow.pop %v1151
    %v1153 = vmul.f32 %v1140, 1.442695
    %v1154 = vpow.pop %v1153
    %v1155 = vmul.f32 %v1141, 1.442695
    %v1156 = vpow.pop %v1155
    %v1157 = vmul.f32 %v1142, 1.442695
    %v1158 = vpow.pop %v1157
    %v1159 = vsel %vm1109, %v1144, 0.0
    %1160 = vadd.xlane.f32.xlu0 %v1159
    %v1161 = vpop.xlane.xlu0 %1160
    %v1162 = vsel %vm1113, %v1146, 0.0
    %1163 = vadd.xlane.f32.xlu0 %v1162
    %v1164 = vpop.xlane.xlu0 %1163
    %v1165 = vsel %vm1109, %v1148, 0.0
    %1166 = vadd.xlane.f32.xlu0 %v1165
    %v1167 = vpop.xlane.xlu0 %1166
    %v1168 = vsel %vm1113, %v1150, 0.0
    %1169 = vadd.xlane.f32.xlu0 %v1168
    %v1170 = vpop.xlane.xlu0 %1169
    %v1171 = vsel %vm1109, %v1152, 0.0
    %1172 = vadd.xlane.f32.xlu0 %v1171
    %v1173 = vpop.xlane.xlu0 %1172
    %v1174 = vsel %vm1113, %v1154, 0.0
    %1175 = vadd.xlane.f32.xlu0 %v1174
    %v1176 = vpop.xlane.xlu0 %1175
    %v1177 = vsel %vm1109, %v1156, 0.0
    %1178 = vadd.xlane.f32.xlu0 %v1177
    %v1179 = vpop.xlane.xlu0 %1178
    %v1180 = vsel %vm1113, %v1158, 0.0
    %1181 = vadd.xlane.f32.xlu0 %v1180
    %v1182 = vpop.xlane.xlu0 %1181
    %v1183 = vrcp.pop %v1161
    %v1184 = vrcp.pop %v1164
    %v1185 = vrcp.pop %v1167
    %v1186 = vrcp.pop %v1170
    %v1187 = vrcp.pop %v1173
    %v1188 = vrcp.pop %v1176
    %v1189 = vrcp.pop %v1179
    %v1190 = vrcp.pop %v1182
    %v1191 = vmul.f32 %v1183, 0.25
    %v1192 = vmul.f32 %v1184, 0.25
    %v1193 = vmul.f32 %v1185, 0.25
    %v1194 = vmul.f32 %v1186, 0.25
    %v1195 = vmul.f32 %v1187, 0.25
    %v1196 = vmul.f32 %v1188, 0.25
    %v1197 = vmul.f32 %v1189, 0.25
    %v1198 = vmul.f32 %v1190, 0.25
    %v1199 = vmul.f32 %v1144, %v1191
    %v1200 = vmul.f32 %v1146, %v1192
    %v1201 = vmul.f32 %v1148, %v1193
    %v1202 = vmul.f32 %v1150, %v1194
    %v1203 = vmul.f32 %v1152, %v1195
    %v1204 = vmul.f32 %v1154, %v1196
    %v1205 = vmul.f32 %v1156, %v1197
    %v1206 = vmul.f32 %v1158, %v1198
    %v1207 = vsel %vm1109, %v1199, 0.0
    %v1208 = vsel %vm1109, %v1201, 0.0
    %v1209 = vadd.f32 %v1207, %v1208
    %v1210 = vsel %vm1109, %v1203, 0.0
    %v1211 = vadd.f32 %v1209, %v1210
    %v1212 = vsel %vm1109, %v1205, 0.0
    %v1213 = vadd.f32 %v1211, %v1212
    %v1214 = vsel %vm1113, %v1200, 0.0
    %v1215 = vsel %vm1113, %v1202, 0.0
    %v1216 = vadd.f32 %v1214, %v1215
    %v1217 = vsel %vm1113, %v1204, 0.0
    %v1218 = vadd.f32 %v1216, %v1217
    %v1219 = vsel %vm1113, %v1206, 0.0
    %v1220 = vadd.f32 %v1218, %v1219
    %v1221 = vpack.c.bf16 %v1220, %v1213
    %v1224 = vsel %vm1109, %v1221, 0
    %vm1226 = vcmask 1042432
    %vm1227 = vcmask 1043456
    %v1228 = vsel %vm1226, 4294967295, 65535
    %v1229 = vsel %vm1227, %v1228, 0
    %v1230 = vand.u32 %v166, %v1229
    %1232 = vmatprep.subr.bf16.mxu0 0
    %1233 = vmatpush1.bf16.msra.mxu0 %v165
    %1234 = vmatprep.subr.bf16.mxu0 0
    %1235 = vmatpush1.bf16.msra.mxu0 %v1230
    %1236 = vmatprep.subr.bf16.mxu0 0
    %1237 = vmatpush1.bf16.msra.mxu0 0
    %1238 = vmatprep.subr.bf16.mxu0 0
    %1239 = vmatpush1.bf16.msra.mxu0 0
    %1240 = vmatprep.subr.bf16.mxu0 0
    %1241 = vmatpush1.bf16.msra.mxu0 0
    %1242 = vmatprep.subr.bf16.mxu0 0
    %1243 = vmatpush1.bf16.msra.mxu0 0
    %1244 = vmatprep.subr.bf16.mxu0 0
    %1245 = vmatpush1.bf16.msra.mxu0 0
    %1246 = vmatprep.subr.bf16.mxu0 0
    %1247 = vmatpush1.bf16.msra.mxu0 0
    %1248 = vmatprep.subr.bf16.mxu0 0
    %1249 = vmatpush1.bf16.msra.mxu0 0
    %1250 = vmatprep.subr.bf16.mxu0 0
    %1251 = vmatpush1.bf16.msra.mxu0 0
    %1252 = vmatprep.subr.bf16.mxu0 0
    %1253 = vmatpush1.bf16.msra.mxu0 0
    %1254 = vmatprep.subr.bf16.mxu0 0
    %1255 = vmatpush1.bf16.msra.mxu0 0
    %1256 = vmatprep.subr.bf16.mxu0 0
    %1257 = vmatpush1.bf16.msra.mxu0 0
    %1258 = vmatprep.subr.bf16.mxu0 0
    %1259 = vmatpush1.bf16.msra.mxu0 0
    %1260 = vmatprep.subr.bf16.mxu0 0
    %1261 = vmatpush1.bf16.msra.mxu0 0
    %1262 = vmatprep.subr.bf16.mxu0 0
    %1263 = vmatpush1.bf16.msra.mxu0 0
    %1264 = vmatprep.mubr.bf16.mxu0 0
    %1265 = vmatmul.mubr.bf16.gmra.mrb[0].mxu0 %v1224
    %v1266 = vpop.f32.mrb[0].mxu0
    %v1267 = vadd.f32 0.0, %v1266
    %v1268 = vpop.f32.mrb[0].mxu0
    %v1269 = vpop.f32.mrb[0].mxu0
    %v1270 = vadd.f32 0.0, %v1269
    %v1271 = vpop.f32.mrb[0].mxu0
    %1272 = vdwg.mxu0
    %v1273 = vld [vmem:[#allocation10] sm:$0xf]
    %v1274 = vld [vmem:[#allocation10 + $0x4] sm:$0xf]
    %v1275 = vld [vmem:[#allocation10 + $0x8] sm:$0xf]
    %v1276 = vld [vmem:[#allocation10 + $0xc] sm:$0xf]
    %v1277 = vpack.c.bf16 %v845, %v842
    %v1278 = vpack.c.bf16 %v850, %v850
    %v1279 = vld [vmem:[#allocation11] sm:$0xf]
    %v1280 = vld [vmem:[#allocation11 + $0x4] sm:$0xf]
    %v1281 = vld [vmem:[#allocation11 + $0x8] sm:$0xf]
    %v1282 = vld [vmem:[#allocation11 + $0xc] sm:$0xf]
    %v1287 = vunpack.c.l.b16 %v1279
    %v1288 = vunpack.c.l.b16 %v1280
    %v1289 = vunpack.c.l.b16 %v1281
    %v1290 = vunpack.c.l.b16 %v1282
    %v1291 = vpack.c.b16 %v1288, %v1287
    %v1292 = vpack.c.b16 %v1290, %v1289
    %v1296 = vsel %vm179, %v1277, 0
    %v1299 = vsel %vm179, %v1278, 0
    %1301 = vmatprep.subr.bf16.mxu0 0
    %1302 = vmatpush1.bf16.msra.mxu0 %v1291
    %1303 = vmatprep.subr.bf16.mxu0 0
    %1304 = vmatpush1.bf16.msra.mxu0 %v1292
    %1305 = vmatprep.subr.bf16.mxu0 0
    %1306 = vmatpush1.bf16.msra.mxu0 0
    %1307 = vmatprep.subr.bf16.mxu0 0
    %1308 = vmatpush1.bf16.msra.mxu0 0
    %1309 = vmatprep.subr.bf16.mxu0 0
    %1310 = vmatpush1.bf16.msra.mxu0 0
    %1311 = vmatprep.subr.bf16.mxu0 0
    %1312 = vmatpush1.bf16.msra.mxu0 0
    %1313 = vmatprep.subr.bf16.mxu0 0
    %1314 = vmatpush1.bf16.msra.mxu0 0
    %1315 = vmatprep.subr.bf16.mxu0 0
    %1316 = vmatpush1.bf16.msra.mxu0 0
    %1317 = vmatprep.subr.bf16.mxu0 0
    %1318 = vmatpush1.bf16.msra.mxu0 0
    %1319 = vmatprep.subr.bf16.mxu0 0
    %1320 = vmatpush1.bf16.msra.mxu0 0
    %1321 = vmatprep.subr.bf16.mxu0 0
    %1322 = vmatpush1.bf16.msra.mxu0 0
    %1323 = vmatprep.subr.bf16.mxu0 0
    %1324 = vmatpush1.bf16.msra.mxu0 0
    %1325 = vmatprep.subr.bf16.mxu0 0
    %1326 = vmatpush1.bf16.msra.mxu0 0
    %1327 = vmatprep.subr.bf16.mxu0 0
    %1328 = vmatpush1.bf16.msra.mxu0 0
    %1329 = vmatprep.subr.bf16.mxu0 0
    %1330 = vmatpush1.bf16.msra.mxu0 0
    %1331 = vmatprep.subr.bf16.mxu0 0
    %1332 = vmatpush1.bf16.msra.mxu0 0
    %1333 = vmatprep.mubr.bf16.mxu0 0
    %1334 = vmatmul.mubr.bf16.gmra.mrb[0].mxu0 %v1296
    %v1335 = vpop.f32.mrb[0].mxu0
    %v1336 = vadd.f32 0.0, %v1335
    %v1337 = vpop.f32.mrb[0].mxu0
    %v1338 = vpop.f32.mrb[0].mxu0
    %v1339 = vadd.f32 0.0, %v1338
    %v1340 = vpop.f32.mrb[0].mxu0
    %1341 = vmatprep.mubr.bf16.mxu0 0
    %1342 = vmatmul.mubr.bf16.gmra.mrb[0].mxu0 %v1299
    %v1343 = vpop.f32.mrb[0].mxu0
    %v1344 = vadd.f32 0.0, %v1343
    %v1345 = vpop.f32.mrb[0].mxu0
    %v1346 = vpop.f32.mrb[0].mxu0
    %v1347 = vpop.f32.mrb[0].mxu0
    %1348 = vdwg.mxu0
    %v1353 = vunpack.c.l.b16 %v1273
    %v1354 = vunpack.c.l.b16 %v1274
    %v1355 = vunpack.c.l.b16 %v1275
    %v1356 = vunpack.c.l.b16 %v1276
    %v1357 = vpack.c.b16 %v1354, %v1353
    %v1358 = vpack.c.b16 %v1356, %v1355
    %1361 = vmatprep.subr.bf16.mxu0 0
    %1362 = vmatpush1.bf16.msra.mxu0 %v1357
    %1363 = vmatprep.subr.bf16.mxu0 0
    %1364 = vmatpush1.bf16.msra.mxu0 %v1358
    %1365 = vmatprep.subr.bf16.mxu0 0
    %1366 = vmatpush1.bf16.msra.mxu0 0
    %1367 = vmatprep.subr.bf16.mxu0 0
    %1368 = vmatpush1.bf16.msra.mxu0 0
    %1369 = vmatprep.subr.bf16.mxu0 0
    %1370 = vmatpush1.bf16.msra.mxu0 0
    %1371 = vmatprep.subr.bf16.mxu0 0
    %1372 = vmatpush1.bf16.msra.mxu0 0
    %1373 = vmatprep.subr.bf16.mxu0 0
    %1374 = vmatpush1.bf16.msra.mxu0 0
    %1375 = vmatprep.subr.bf16.mxu0 0
    %1376 = vmatpush1.bf16.msra.mxu0 0
    %1377 = vmatprep.subr.bf16.mxu0 0
    %1378 = vmatpush1.bf16.msra.mxu0 0
    %1379 = vmatprep.subr.bf16.mxu0 0
    %1380 = vmatpush1.bf16.msra.mxu0 0
    %1381 = vmatprep.subr.bf16.mxu0 0
    %1382 = vmatpush1.bf16.msra.mxu0 0
    %1383 = vmatprep.subr.bf16.mxu0 0
    %1384 = vmatpush1.bf16.msra.mxu0 0
    %1385 = vmatprep.subr.bf16.mxu0 0
    %1386 = vmatpush1.bf16.msra.mxu0 0
    %1387 = vmatprep.subr.bf16.mxu0 0
    %1388 = vmatpush1.bf16.msra.mxu0 0
    %1389 = vmatprep.subr.bf16.mxu0 0
    %1390 = vmatpush1.bf16.msra.mxu0 0
    %1391 = vmatprep.subr.bf16.mxu0 0
    %1392 = vmatpush1.bf16.msra.mxu0 0
    %1393 = vmatprep.mubr.bf16.mxu0 0
    %1394 = vmatmul.mubr.bf16.gmra.mrb[0].mxu0 %v181
    %v1395 = vpop.f32.mrb[0].mxu0
    %v1396 = vadd.f32 %v1336, %v1395
    %v1397 = vpop.f32.mrb[0].mxu0
    %v1398 = vpop.f32.mrb[0].mxu0
    %v1399 = vadd.f32 %v1339, %v1398
    %v1400 = vpop.f32.mrb[0].mxu0
    %1401 = vmatprep.mubr.bf16.mxu0 0
    %1402 = vmatmul.mubr.bf16.gmra.mrb[0].mxu0 %v184
    %v1403 = vpop.f32.mrb[0].mxu0
    %v1404 = vadd.f32 %v1344, %v1403
    %v1405 = vpop.f32.mrb[0].mxu0
    %v1406 = vpop.f32.mrb[0].mxu0
    %v1407 = vpop.f32.mrb[0].mxu0
    %1408 = vdwg.mxu0
    %v1409 = vld [vmem:[%s12] sm:$0x1]
    %v1411 = vlaneseq
    %v1412 = vshrl.u32 %v1411, 7
    %v1413 = vsub.s32 0, %v1412
    %v1414 = vrot.slane %v1409, %v1413
    %v1416 = vadd.f32 %v1396, %v1414
    %v1417 = vadd.f32 %v1399, %v1414
    %v1418 = vadd.f32 %v1404, %v1414
    %v1419 = vld [vmem:[%s2] sm:$0xff]
    %v1420 = vld [vmem:[%s2 + $0x8] sm:$0xff]
    %v1421 = vld [vmem:[%s2 + $0x10] sm:$0xf]
    %v1422 = vmax.f32 %v1416, 0.0
    %v1423 = vmax.f32 %v1417, 0.0
    %v1424 = vmax.f32 %v1418, 0.0
    %v1425 = vadd.f32 %v1419, %v1422
    %v1426 = vadd.f32 %v1420, %v1423
    %v1427 = vadd.f32 %v1421, %v1424
    %1428 = vst.msk [vmem:[#allocation14] sm:$0xff] %vm179, %v1425
    %1429 = vst.msk [vmem:[#allocation14 + $0x8] sm:$0xff] %vm179, %v1426
    %vm1430 = vcmask 257024
    %1431 = vst.msk [vmem:[#allocation14 + $0x10] sm:$0xf] %vm1430, %v1427
    %v1432 = vld [vmem:[%s13] sm:$0xf]
    %v1433 = vld [vmem:[%s13 + $0x4] sm:$0xf]
    %v1434 = vld [vmem:[%s13 + $0x8] sm:$0xf]
    %v1435 = vld [vmem:[%s13 + $0xc] sm:$0xf]
    %v1436 = vpack.c.bf16 %v1270, %v1267
    %v1437 = vld [vmem:[#allocation13] sm:$0xf]
    %v1438 = vld [vmem:[#allocation13 + $0x4] sm:$0xf]
    %v1439 = vld [vmem:[#allocation13 + $0x8] sm:$0xf]
    %v1440 = vld [vmem:[#allocation13 + $0xc] sm:$0xf]
    %v1445 = vunpack.c.l.b16 %v1437
    %v1446 = vunpack.c.l.b16 %v1438
    %v1447 = vunpack.c.l.b16 %v1439
    %v1448 = vunpack.c.l.b16 %v1440
    %v1449 = vpack.c.b16 %v1446, %v1445
    %v1450 = vpack.c.b16 %v1448, %v1447
    %v1454 = vsel %vm179, %v1436, 0
    %1456 = vmatprep.subr.bf16.mxu0 0
    %1457 = vmatpush1.bf16.msra.mxu0 %v1449
    %1458 = vmatprep.subr.bf16.mxu0 0
    %1459 = vmatpush1.bf16.msra.mxu0 %v1450
    %1460 = vmatprep.subr.bf16.mxu0 0
    %1461 = vmatpush1.bf16.msra.mxu0 0
    %1462 = vmatprep.subr.bf16.mxu0 0
    %1463 = vmatpush1.bf16.msra.mxu0 0
    %1464 = vmatprep.subr.bf16.mxu0 0
    %1465 = vmatpush1.bf16.msra.mxu0 0
    %1466 = vmatprep.subr.bf16.mxu0 0
    %1467 = vmatpush1.bf16.msra.mxu0 0
    %1468 = vmatprep.subr.bf16.mxu0 0
    %1469 = vmatpush1.bf16.msra.mxu0 0
    %1470 = vmatprep.subr.bf16.mxu0 0
    %1471 = vmatpush1.bf16.msra.mxu0 0
    %1472 = vmatprep.subr.bf16.mxu0 0
    %1473 = vmatpush1.bf16.msra.mxu0 0
    %1474 = vmatprep.subr.bf16.mxu0 0
    %1475 = vmatpush1.bf16.msra.mxu0 0
    %1476 = vmatprep.subr.bf16.mxu0 0
    %1477 = vmatpush1.bf16.msra.mxu0 0
    %1478 = vmatprep.subr.bf16.mxu0 0
    %1479 = vmatpush1.bf16.msra.mxu0 0
    %1480 = vmatprep.subr.bf16.mxu0 0
    %1481 = vmatpush1.bf16.msra.mxu0 0
    %1482 = vmatprep.subr.bf16.mxu0 0
    %1483 = vmatpush1.bf16.msra.mxu0 0
    %1484 = vmatprep.subr.bf16.mxu0 0
    %1485 = vmatpush1.bf16.msra.mxu0 0
    %1486 = vmatprep.subr.bf16.mxu0 0
    %1487 = vmatpush1.bf16.msra.mxu0 0
    %1488 = vmatprep.mubr.bf16.mxu0 0
    %1489 = vmatmul.mubr.bf16.gmra.mrb[0].mxu0 %v1454
    %v1490 = vpop.f32.mrb[0].mxu0
    %v1491 = vadd.f32 0.0, %v1490
    %v1492 = vpop.f32.mrb[0].mxu0
    %v1493 = vpop.f32.mrb[0].mxu0
    %v1494 = vadd.f32 0.0, %v1493
    %v1495 = vpop.f32.mrb[0].mxu0
    %1496 = vdwg.mxu0
    %v1501 = vunpack.c.l.b16 %v1432
    %v1502 = vunpack.c.l.b16 %v1433
    %v1503 = vunpack.c.l.b16 %v1434
    %v1504 = vunpack.c.l.b16 %v1435
    %v1505 = vpack.c.b16 %v1502, %v1501
    %v1506 = vpack.c.b16 %v1504, %v1503
    %1509 = vmatprep.subr.bf16.mxu0 0
    %1510 = vmatpush1.bf16.msra.mxu0 %v1505
    %1511 = vmatprep.subr.bf16.mxu0 0
    %1512 = vmatpush1.bf16.msra.mxu0 %v1506
    %1513 = vmatprep.subr.bf16.mxu0 0
    %1514 = vmatpush1.bf16.msra.mxu0 0
    %1515 = vmatprep.subr.bf16.mxu0 0
    %1516 = vmatpush1.bf16.msra.mxu0 0
    %1517 = vmatprep.subr.bf16.mxu0 0
    %1518 = vmatpush1.bf16.msra.mxu0 0
    %1519 = vmatprep.subr.bf16.mxu0 0
    %1520 = vmatpush1.bf16.msra.mxu0 0
    %1521 = vmatprep.subr.bf16.mxu0 0
    %1522 = vmatpush1.bf16.msra.mxu0 0
    %1523 = vmatprep.subr.bf16.mxu0 0
    %1524 = vmatpush1.bf16.msra.mxu0 0
    %1525 = vmatprep.subr.bf16.mxu0 0
    %1526 = vmatpush1.bf16.msra.mxu0 0
    %1527 = vmatprep.subr.bf16.mxu0 0
    %1528 = vmatpush1.bf16.msra.mxu0 0
    %1529 = vmatprep.subr.bf16.mxu0 0
    %1530 = vmatpush1.bf16.msra.mxu0 0
    %1531 = vmatprep.subr.bf16.mxu0 0
    %1532 = vmatpush1.bf16.msra.mxu0 0
    %1533 = vmatprep.subr.bf16.mxu0 0
    %1534 = vmatpush1.bf16.msra.mxu0 0
    %1535 = vmatprep.subr.bf16.mxu0 0
    %1536 = vmatpush1.bf16.msra.mxu0 0
    %1537 = vmatprep.subr.bf16.mxu0 0
    %1538 = vmatpush1.bf16.msra.mxu0 0
    %1539 = vmatprep.subr.bf16.mxu0 0
    %1540 = vmatpush1.bf16.msra.mxu0 0
    %1541 = vmatprep.mubr.bf16.mxu0 0
    %1542 = vmatmul.mubr.bf16.gmra.mrb[0].mxu0 %v259
    %v1543 = vpop.f32.mrb[0].mxu0
    %v1544 = vadd.f32 %v1491, %v1543
    %v1545 = vpop.f32.mrb[0].mxu0
    %v1546 = vpop.f32.mrb[0].mxu0
    %v1547 = vadd.f32 %v1494, %v1546
    %v1548 = vpop.f32.mrb[0].mxu0
    %1549 = vdwg.mxu0
    %v1550 = vld [vmem:[%s15] sm:$0x1]
    %v1552 = vlaneseq
    %v1553 = vshrl.u32 %v1552, 7
    %v1554 = vsub.s32 0, %v1553
    %v1555 = vrot.slane %v1550, %v1554
    %v1557 = vadd.f32 %v1544, %v1555
    %v1558 = vadd.f32 %v1547, %v1555
    %v1559 = vld [vmem:[%s3] sm:$0xff]
    %v1560 = vld [vmem:[%s3 + $0x8] sm:$0x3f]
    %v1561 = vmax.f32 %v1557, 0.0
    %v1562 = vmax.f32 %v1558, 0.0
    %v1563 = vadd.f32 %v1559, %v1561
    %v1564 = vadd.f32 %v1560, %v1562
    %1565 = vst.msk [vmem:[#allocation15] sm:$0xff] %vm179, %v1563
    %vm1566 = vcmask 259072
    %1567 = vst.msk [vmem:[#allocation15 + $0x8] sm:$0x3f] %vm1566, %v1564
    // Predicated region
    $region94: #{tpu_custom_call.1} parent=1 // pred_check
      _
    $region95: #{tpu_custom_call.1} parent=1 // pred_check_branch
      %1569 = sbr.rel (0) target = $region97
    $region96: #{tpu_custom_call.1} parent=1 // pred_region
      %s1571 = ssub.s32 384, 384
      %1572 = vsyncadd [#allocation4], %s1571
      %s1573 = sshll.u32 [#allocation14], 4
      %s1574 = int_to_ptr.vmem [resolvable:$true] %s1573
      %1579 = dma.vmem_to_hbm [thread:$0]  %s1574, 384, %s16, [#allocation4], 128, 128, 8
    $region97: #{tpu_custom_call.1} parent=1 // pred_fallthru
      _
    // Predicated region
    $region98: #{tpu_custom_call.1} parent=1 // pred_check
      _
    $region99: #{tpu_custom_call.1} parent=1 // pred_check_branch
      %1581 = sbr.rel (0) target = $region101
    $region100: #{tpu_custom_call.1} parent=1 // pred_region
      %s1583 = ssub.s32 256, 256
      %1584 = vsyncadd [#allocation16], %s1583
      %s1585 = sshll.u32 [#allocation15], 4
      %s1586 = int_to_ptr.vmem [resolvable:$true] %s1585
      %1591 = dma.vmem_to_hbm [thread:$0]  %s1586, 256, %s17, [#allocation16], 128, 128, 8
    $region101: #{tpu_custom_call.1} parent=1 // pred_fallthru
      _
    // Predicated region
    $region102: #{tpu_custom_call.1} parent=1 // pred_check
      _
    $region103: #{tpu_custom_call.1} parent=1 // pred_check_branch
      %1593 = sbr.rel (0) target = $region105
    $region104: #{tpu_custom_call.1} parent=1 // pred_region
      %1594 = dma.done [#allocation4], 384
    $region105: #{tpu_custom_call.1} parent=1 // pred_fallthru
      _
    // Predicated region
    $region106: #{tpu_custom_call.1} parent=1 // pred_check
      _
    $region107: #{tpu_custom_call.1} parent=1 // pred_check_branch
      %1596 = sbr.rel (0) target = $region109
    $region108: #{tpu_custom_call.1} parent=1 // pred_region
      %1597 = dma.done [#allocation16], 256
    $region109: #{tpu_custom_call.1} parent=1 // pred_fallthru
      _
    %1598 = vsyncpa [#allocation3], 1
    %1599 = vsyncpa [#allocation6], 1
    %1600 = vsyncpa [#allocation9], 1
    %1601 = vsyncpa [#allocation12], 1
    %1602 = vsyncpa [#allocation4], 1
    %1603 = vsyncpa [#allocation16], 1

</llo_original>
